<compile_context>
chip_gen: v7x
topology: tpu7x:2x2x1
jax: 0.10.0
libtpu: 0.0.40
codegen_flags: <defaults>
</compile_context>

<pallas_src>
from functools import partial

import numpy as np
import jax
import jax.numpy as jnp
from jax.experimental import pallas as pl
from jax.experimental.pallas import tpu as pltpu


# ---------------------------------------------------------------------------
# Pallas kernel
# ---------------------------------------------------------------------------

def _vmem_specs(n):
    return [pl.BlockSpec(memory_space=pltpu.MemorySpace.VMEM) for _ in range(n)]


def _sigmoid(x):
    # Numerically stable sigmoid using only exp / abs / where / div.
    e = jnp.exp(-jnp.abs(x))
    return jnp.where(x >= 0, 1.0, e) / (1.0 + e)


def _fused_forward_kernel(num_steps, hidden,
                          x_ref, wembT_ref, adj_ref, pool_ref,
                          wmsg_ref, wi3_ref, wh3_ref, bsum_ref, bhn_ref,
                          w1T_ref, b1_ref, w2T_ref, b2_ref,
                          o_ref):
    f32 = jnp.float32
    h = hidden

    # ---- EmbeddingBlock: relu(x @ W_emb^T); zero-pad to hidden width is folded
    #      into zero columns of wembT (relu(0) == 0), matching GatedGraphConv. ----
    x = jnp.maximum(
        jnp.dot(x_ref[...], wembT_ref[...], preferred_element_type=f32), 0.0)

    adj = adj_ref[...]        # [N, N] dense adjacency (A[dst, src] = multiplicity)
    wi3 = wi3_ref[...]        # [H, 3H] = [W_ir | W_iz | W_in]^T
    wh3 = wh3_ref[...]        # [H, 3H] = [W_hr | W_hz | W_hn]^T
    bsum = bsum_ref[...]      # [1, 3H] = [b_ir+b_hr | b_iz+b_hz | b_in]
    bhn = bhn_ref[...]        # [1, H]  = b_hn (kept separate: scaled by r)

    # ---- GatedGraphConv (aggr='add') with fused GRU gate matmuls ----
    for s in range(num_steps):
        xw = jnp.dot(x, wmsg_ref[s], preferred_element_type=f32)     # [N, H]
        m = jnp.dot(adj, xw, preferred_element_type=f32)             # [N, H]
        g_i = jnp.dot(m, wi3, preferred_element_type=f32) + bsum     # [N, 3H]
        g_h = jnp.dot(x, wh3, preferred_element_type=f32)            # [N, 3H]
        r = _sigmoid(g_i[:, :h] + g_h[:, :h])
        z = _sigmoid(g_i[:, h:2 * h] + g_h[:, h:2 * h])
        n = jnp.tanh(g_i[:, 2 * h:] + r * (g_h[:, 2 * h:] + bhn))
        x = (1.0 - z) * n + z * x

    # ---- ReLU + global_mean_pool (row-normalized pooling matmul) ----
    x = jnp.maximum(x, 0.0)
    hg = jnp.dot(pool_ref[...], x, preferred_element_type=f32)       # [B, H]

    # ---- OutputBlock: softplus(lin2(relu(lin1(hg)))) ----
    h1 = jnp.maximum(
        jnp.dot(hg, w1T_ref[...], preferred_element_type=f32) + b1_ref[...], 0.0)
    y = jnp.dot(h1, w2T_ref[...], preferred_element_type=f32) + b2_ref[...]
    o_ref[...] = jnp.maximum(y, 0.0) + jnp.log(1.0 + jnp.exp(-jnp.abs(y)))


# ---------------------------------------------------------------------------
# JAX glue: graph densification, parameter packing, jitted forward
# ---------------------------------------------------------------------------

def dense_adj(edge_index, num_nodes):
    # out[i] = sum over edges (j -> i) of msg[j]  (PyG aggr='add', source_to_target)
    src, dst = edge_index[0], edge_index[1]
    a = jnp.zeros((num_nodes, num_nodes), jnp.float32)
    return a.at[dst, src].add(1.0)


def mean_pool_matrix(batch, num_graphs):
    onehot = (batch[None, :] == jnp.arange(num_graphs, dtype=batch.dtype)[:, None])
    onehot = onehot.astype(jnp.float32)
    counts = jnp.maximum(onehot.sum(axis=1, keepdims=True), 1.0)
    return onehot / counts


def init_params(key, feat, emb, hidden, steps):
    # torch layouts: Linear weight [out, in]; GRUCell w_ih/w_hh [3H, H] (gates r,z,n)
    ks = jax.random.split(key, 10)

    def w(k, shape, scale=0.1):
        return (scale * jax.random.normal(k, shape)).astype(jnp.float32)

    return {
        "emb_w":      w(ks[0], (emb, feat)),               # EmbeddingBlock.lin (no bias)
        "ggc_weight": w(ks[1], (steps, hidden, hidden)),   # GatedGraphConv.weight
        "gru_w_ih":   w(ks[2], (3 * hidden, hidden)),
        "gru_w_hh":   w(ks[3], (3 * hidden, hidden)),
        "gru_b_ih":   w(ks[4], (3 * hidden,)),
        "gru_b_hh":   w(ks[5], (3 * hidden,)),
        "out_w1":     w(ks[6], (hidden, hidden)),
        "out_b1":     w(ks[7], (hidden,)),
        "out_w2":     w(ks[8], (1, hidden)),
        "out_b2":     w(ks[9], (1,)),
    }


def pack_params(p, hidden):
    """One-time weight layout prep: transposes, gate fusion, bias pre-summing."""
    h = hidden
    emb = p["emb_w"].shape[0]
    assert emb <= h, "GatedGraphConv requires embedding width <= hidden (voro_h)"
    b_ih, b_hh = p["gru_b_ih"], p["gru_b_hh"]
    return {
        "wembT": jnp.pad(p["emb_w"].T, ((0, 0), (0, h - emb))),   # [F, H], pad fused in
        "wmsg":  p["ggc_weight"],                                 # [S, H, H]
        "wi3":   p["gru_w_ih"].T,                                 # [H, 3H]
        "wh3":   p["gru_w_hh"].T,                                 # [H, 3H]
        "bsum":  jnp.concatenate([b_ih[:h] + b_hh[:h],
                                  b_ih[h:2 * h] + b_hh[h:2 * h],
                                  b_ih[2 * h:]]).reshape(1, 3 * h),
        "bhn":   b_hh[2 * h:].reshape(1, h),
        "w1T":   p["out_w1"].T,
        "b1":    p["out_b1"].reshape(1, h),
        "w2T":   p["out_w2"].T,
        "b2":    p["out_b2"].reshape(1, 1),
    }


@partial(jax.jit, static_argnames=("num_graphs", "hidden", "steps"))
def pore_graph_gnn_forward(packed, x, edge_index, batch, *, num_graphs, hidden, steps):
    adj = dense_adj(edge_index, x.shape[0])
    pool = mean_pool_matrix(batch, num_graphs)
    out = pl.pallas_call(
        partial(_fused_forward_kernel, steps, hidden),
        out_shape=jax.ShapeDtypeStruct((num_graphs, 1), jnp.float32),
        in_specs=_vmem_specs(13),
        out_specs=pl.BlockSpec(memory_space=pltpu.MemorySpace.VMEM),
    )(x, packed["wembT"], adj, pool, packed["wmsg"], packed["wi3"], packed["wh3"],
      packed["bsum"], packed["bhn"], packed["w1T"], packed["b1"],
      packed["w2T"], packed["b2"])
    return out[:, 0]                                             # .squeeze(1)


# ---------------------------------------------------------------------------
# Pure-JAX reference (unfused, torch-faithful) for the correctness check
# ---------------------------------------------------------------------------

def reference_forward(p, x, edge_index, batch, num_graphs, hidden, steps):
    relu = lambda v: jnp.maximum(v, 0.0)
    sig = lambda v: 1.0 / (1.0 + jnp.exp(-v))
    h = hidden
    e = relu(x @ p["emb_w"].T)
    xk = jnp.pad(e, ((0, 0), (0, h - e.shape[1])))
    adj = dense_adj(edge_index, x.shape[0])
    for s in range(steps):
        m = adj @ (xk @ p["ggc_weight"][s])
        gi = m @ p["gru_w_ih"].T + p["gru_b_ih"]
        gh = xk @ p["gru_w_hh"].T + p["gru_b_hh"]
        r = sig(gi[:, :h] + gh[:, :h])
        z = sig(gi[:, h:2 * h] + gh[:, h:2 * h])
        n = jnp.tanh(gi[:, 2 * h:] + r * gh[:, 2 * h:])
        xk = (1.0 - z) * n + z * xk
    xk = relu(xk)
    g = mean_pool_matrix(batch, num_graphs) @ xk
    h1 = relu(g @ p["out_w1"].T + p["out_b1"])
    y = h1 @ p["out_w2"].T + p["out_b2"]
    sp = jnp.maximum(y, 0.0) + jnp.log(1.0 + jnp.exp(-jnp.abs(y)))
    return sp[:, 0]


# ---------------------------------------------------------------------------
# Main
# ---------------------------------------------------------------------------

def ring_edges(num_graphs, nodes_per_graph):
    srcs, dsts = [], []
    for g in range(num_graphs):
        off = g * nodes_per_graph
        for i in range(nodes_per_graph):
            j = (i + 1) % nodes_per_graph
            srcs += [off + i, off + j]
            dsts += [off + j, off + i]
    return jnp.array([srcs, dsts], dtype=jnp.int32)


if __name__ == "__main__":
    B = 2                      # graphs in the batch
    NODES_PER_GRAPH = 8
    N = B * NODES_PER_GRAPH    # 16 voronoi nodes
    FEAT = 10                  # node_feature_length (one-hot length)
    EMB = 16                   # args.voro_embedding
    HIDDEN = 32                # args.voro_h
    STEPS = 3                  # args.mpnn_steps  (mpnn_aggr='add')

    key = jax.random.PRNGKey(0)
    kx, kp = jax.random.split(key)
    x = jax.random.normal(kx, (N, FEAT), jnp.float32)
    edge_index = ring_edges(B, NODES_PER_GRAPH)
    batch = jnp.repeat(jnp.arange(B, dtype=jnp.int32), NODES_PER_GRAPH)

    params = init_params(kp, FEAT, EMB, HIDDEN, STEPS)
    packed = pack_params(params, HIDDEN)

    out = pore_graph_gnn_forward(packed, x, edge_index, batch,
                                 num_graphs=B, hidden=HIDDEN, steps=STEPS)
    out = jax.block_until_ready(out)
    assert out.shape == (B,)

    ref = jax.block_until_ready(
        reference_forward(params, x, edge_index, batch, B, HIDDEN, STEPS))
    np.testing.assert_allclose(np.asarray(out), np.asarray(ref), rtol=2e-2, atol=2e-2)

    print("KERNEL_OK")
</pallas_src>

<mosaic_0001>
module attributes {stable_mosaic.version = 11 : i64} {
  func.func private @main(%arg0: i32) attributes {dimension_semantics = [#tpu.dimension_semantics<core_parallel>], iteration_bounds = array<i64: 2>, tpu.core_type = #tpu.core_type<sc_scalar_subcore>, window_params = []} {
    return
  }
}

module attributes {stable_mosaic.version = 11 : i64} {
  func.func private @main(%arg0: i32) attributes {dimension_semantics = [#tpu.dimension_semantics<core_parallel>], iteration_bounds = array<i64: 2>, tpu.core_type = #tpu.core_type<sc_scalar_subcore>, window_params = []} {
    return
  }
}

module attributes {stable_mosaic.version = 11 : i64} {
  func.func @_fused_forward_kernel(%arg0: memref<16x10xf32, #tpu.memory_space<vmem>>, %arg1: memref<10x32xf32, #tpu.memory_space<vmem>>, %arg2: memref<16x16xf32, #tpu.memory_space<vmem>>, %arg3: memref<2x16xf32, #tpu.memory_space<vmem>>, %arg4: memref<3x32x32xf32, #tpu.memory_space<vmem>>, %arg5: memref<32x96xf32, #tpu.memory_space<vmem>>, %arg6: memref<32x96xf32, #tpu.memory_space<vmem>>, %arg7: memref<1x96xf32, #tpu.memory_space<vmem>>, %arg8: memref<1x32xf32, #tpu.memory_space<vmem>>, %arg9: memref<32x32xf32, #tpu.memory_space<vmem>>, %arg10: memref<1x32xf32, #tpu.memory_space<vmem>>, %arg11: memref<32x1xf32, #tpu.memory_space<vmem>>, %arg12: memref<1x1xf32, #tpu.memory_space<vmem>>, %arg13: memref<2x1xf32, #tpu.memory_space<vmem>>) attributes {dimension_semantics = [], scalar_prefetch = 0 : i64, scratch_operands = 0 : i64, tpu.core_type = #tpu.core_type<tc>} {
    %c0 = arith.constant 0 : index
    %c0_0 = arith.constant 0 : index
    %0 = vector.load %arg0[%c0, %c0_0] : memref<16x10xf32, #tpu.memory_space<vmem>>, vector<16x10xf32>
    %c0_1 = arith.constant 0 : index
    %c0_2 = arith.constant 0 : index
    %1 = vector.load %arg1[%c0_1, %c0_2] : memref<10x32xf32, #tpu.memory_space<vmem>>, vector<10x32xf32>
    %cst = arith.constant dense<0.000000e+00> : vector<16x32xf32>
    %2 = tpu.matmul %0, %1, %cst {dimension_numbers = #tpu.dot_dimension_numbers<[1], [0], [0], [1], [0, 0, 1, 1], [], []>} : vector<16x10xf32>, vector<10x32xf32>, vector<16x32xf32> -> vector<16x32xf32>
    %cst_3 = arith.constant 0.000000e+00 : f32
    %3 = vector.broadcast %cst_3 : f32 to vector<16x32xf32>
    %4 = arith.maximumf %2, %3 : vector<16x32xf32>
    %c0_4 = arith.constant 0 : index
    %c0_5 = arith.constant 0 : index
    %5 = vector.load %arg2[%c0_4, %c0_5] : memref<16x16xf32, #tpu.memory_space<vmem>>, vector<16x16xf32>
    %c0_6 = arith.constant 0 : index
    %c0_7 = arith.constant 0 : index
    %6 = vector.load %arg5[%c0_6, %c0_7] : memref<32x96xf32, #tpu.memory_space<vmem>>, vector<32x96xf32>
    %c0_8 = arith.constant 0 : index
    %c0_9 = arith.constant 0 : index
    %7 = vector.load %arg6[%c0_8, %c0_9] : memref<32x96xf32, #tpu.memory_space<vmem>>, vector<32x96xf32>
    %c0_10 = arith.constant 0 : index
    %c0_11 = arith.constant 0 : index
    %8 = vector.load %arg7[%c0_10, %c0_11] : memref<1x96xf32, #tpu.memory_space<vmem>>, vector<1x96xf32>
    %c0_12 = arith.constant 0 : index
    %c0_13 = arith.constant 0 : index
    %9 = vector.load %arg8[%c0_12, %c0_13] : memref<1x32xf32, #tpu.memory_space<vmem>>, vector<1x32xf32>
    %c0_14 = arith.constant 0 : index
    %c0_15 = arith.constant 0 : index
    %c0_16 = arith.constant 0 : index
    %10 = vector.load %arg4[%c0_14, %c0_15, %c0_16] : memref<3x32x32xf32, #tpu.memory_space<vmem>>, vector<1x32x32xf32>
    %11 = vector.shape_cast %10 : vector<1x32x32xf32> to vector<32x32xf32>
    %cst_17 = arith.constant dense<0.000000e+00> : vector<16x32xf32>
    %12 = tpu.matmul %4, %11, %cst_17 {dimension_numbers = #tpu.dot_dimension_numbers<[1], [0], [0], [1], [0, 0, 1, 1], [], []>} : vector<16x32xf32>, vector<32x32xf32>, vector<16x32xf32> -> vector<16x32xf32>
    %cst_18 = arith.constant dense<0.000000e+00> : vector<16x32xf32>
    %13 = tpu.matmul %5, %12, %cst_18 {dimension_numbers = #tpu.dot_dimension_numbers<[1], [0], [0], [1], [0, 0, 1, 1], [], []>} : vector<16x16xf32>, vector<16x32xf32>, vector<16x32xf32> -> vector<16x32xf32>
    %cst_19 = arith.constant dense<0.000000e+00> : vector<16x96xf32>
    %14 = tpu.matmul %13, %6, %cst_19 {dimension_numbers = #tpu.dot_dimension_numbers<[1], [0], [0], [1], [0, 0, 1, 1], [], []>} : vector<16x32xf32>, vector<32x96xf32>, vector<16x96xf32> -> vector<16x96xf32>
    %15 = vector.broadcast %8 : vector<1x96xf32> to vector<16x96xf32>
    %16 = arith.addf %14, %15 : vector<16x96xf32>
    %cst_20 = arith.constant dense<0.000000e+00> : vector<16x96xf32>
    %17 = tpu.matmul %4, %7, %cst_20 {dimension_numbers = #tpu.dot_dimension_numbers<[1], [0], [0], [1], [0, 0, 1, 1], [], []>} : vector<16x32xf32>, vector<32x96xf32>, vector<16x96xf32> -> vector<16x96xf32>
    %18 = vector.extract_strided_slice %16 {offsets = [0, 0], sizes = [16, 32], strides = [1, 1]} : vector<16x96xf32> to vector<16x32xf32>
    %19 = vector.extract_strided_slice %17 {offsets = [0, 0], sizes = [16, 32], strides = [1, 1]} : vector<16x96xf32> to vector<16x32xf32>
    %20 = arith.addf %18, %19 : vector<16x32xf32>
    %21 = math.absf %20 : vector<16x32xf32>
    %cst_21 = arith.constant 0.000000e+00 : f32
    %22 = vector.broadcast %cst_21 : f32 to vector<16x32xf32>
    %23 = arith.subf %22, %21 : vector<16x32xf32>
    %24 = math.exp %23 : vector<16x32xf32>
    %cst_22 = arith.constant 0.000000e+00 : f32
    %25 = vector.broadcast %cst_22 : f32 to vector<16x32xf32>
    %26 = arith.cmpf oge, %20, %25 : vector<16x32xf32>
    %cst_23 = arith.constant 1.000000e+00 : f32
    %27 = vector.broadcast %cst_23 : f32 to vector<16x32xf32>
    %28 = arith.select %26, %27, %24 : vector<16x32xi1>, vector<16x32xf32>
    %cst_24 = arith.constant 1.000000e+00 : f32
    %29 = vector.broadcast %cst_24 : f32 to vector<16x32xf32>
    %30 = arith.addf %29, %24 : vector<16x32xf32>
    %31 = arith.divf %28, %30 : vector<16x32xf32>
    %32 = vector.extract_strided_slice %16 {offsets = [0, 32], sizes = [16, 32], strides = [1, 1]} : vector<16x96xf32> to vector<16x32xf32>
    %33 = vector.extract_strided_slice %17 {offsets = [0, 32], sizes = [16, 32], strides = [1, 1]} : vector<16x96xf32> to vector<16x32xf32>
    %34 = arith.addf %32, %33 : vector<16x32xf32>
    %35 = math.absf %34 : vector<16x32xf32>
    %cst_25 = arith.constant 0.000000e+00 : f32
    %36 = vector.broadcast %cst_25 : f32 to vector<16x32xf32>
    %37 = arith.subf %36, %35 : vector<16x32xf32>
    %38 = math.exp %37 : vector<16x32xf32>
    %cst_26 = arith.constant 0.000000e+00 : f32
    %39 = vector.broadcast %cst_26 : f32 to vector<16x32xf32>
    %40 = arith.cmpf oge, %34, %39 : vector<16x32xf32>
    %cst_27 = arith.constant 1.000000e+00 : f32
    %41 = vector.broadcast %cst_27 : f32 to vector<16x32xf32>
    %42 = arith.select %40, %41, %38 : vector<16x32xi1>, vector<16x32xf32>
    %cst_28 = arith.constant 1.000000e+00 : f32
    %43 = vector.broadcast %cst_28 : f32 to vector<16x32xf32>
    %44 = arith.addf %43, %38 : vector<16x32xf32>
    %45 = arith.divf %42, %44 : vector<16x32xf32>
    %46 = vector.extract_strided_slice %16 {offsets = [0, 64], sizes = [16, 32], strides = [1, 1]} : vector<16x96xf32> to vector<16x32xf32>
    %47 = vector.extract_strided_slice %17 {offsets = [0, 64], sizes = [16, 32], strides = [1, 1]} : vector<16x96xf32> to vector<16x32xf32>
    %48 = vector.broadcast %9 : vector<1x32xf32> to vector<16x32xf32>
    %49 = arith.addf %47, %48 : vector<16x32xf32>
    %50 = arith.mulf %31, %49 : vector<16x32xf32>
    %51 = arith.addf %46, %50 : vector<16x32xf32>
    %52 = math.tanh %51 : vector<16x32xf32>
    %cst_29 = arith.constant 1.000000e+00 : f32
    %53 = vector.broadcast %cst_29 : f32 to vector<16x32xf32>
    %54 = arith.subf %53, %45 : vector<16x32xf32>
    %55 = arith.mulf %54, %52 : vector<16x32xf32>
    %56 = arith.mulf %45, %4 : vector<16x32xf32>
    %57 = arith.addf %55, %56 : vector<16x32xf32>
    %c1 = arith.constant 1 : index
    %c0_30 = arith.constant 0 : index
    %c0_31 = arith.constant 0 : index
    %58 = vector.load %arg4[%c1, %c0_30, %c0_31] : memref<3x32x32xf32, #tpu.memory_space<vmem>>, vector<1x32x32xf32>
    %59 = vector.shape_cast %58 : vector<1x32x32xf32> to vector<32x32xf32>
    %cst_32 = arith.constant dense<0.000000e+00> : vector<16x32xf32>
    %60 = tpu.matmul %57, %59, %cst_32 {dimension_numbers = #tpu.dot_dimension_numbers<[1], [0], [0], [1], [0, 0, 1, 1], [], []>} : vector<16x32xf32>, vector<32x32xf32>, vector<16x32xf32> -> vector<16x32xf32>
    %cst_33 = arith.constant dense<0.000000e+00> : vector<16x32xf32>
    %61 = tpu.matmul %5, %60, %cst_33 {dimension_numbers = #tpu.dot_dimension_numbers<[1], [0], [0], [1], [0, 0, 1, 1], [], []>} : vector<16x16xf32>, vector<16x32xf32>, vector<16x32xf32> -> vector<16x32xf32>
    %cst_34 = arith.constant dense<0.000000e+00> : vector<16x96xf32>
    %62 = tpu.matmul %61, %6, %cst_34 {dimension_numbers = #tpu.dot_dimension_numbers<[1], [0], [0], [1], [0, 0, 1, 1], [], []>} : vector<16x32xf32>, vector<32x96xf32>, vector<16x96xf32> -> vector<16x96xf32>
    %63 = vector.broadcast %8 : vector<1x96xf32> to vector<16x96xf32>
    %64 = arith.addf %62, %63 : vector<16x96xf32>
    %cst_35 = arith.constant dense<0.000000e+00> : vector<16x96xf32>
    %65 = tpu.matmul %57, %7, %cst_35 {dimension_numbers = #tpu.dot_dimension_numbers<[1], [0], [0], [1], [0, 0, 1, 1], [], []>} : vector<16x32xf32>, vector<32x96xf32>, vector<16x96xf32> -> vector<16x96xf32>
    %66 = vector.extract_strided_slice %64 {offsets = [0, 0], sizes = [16, 32], strides = [1, 1]} : vector<16x96xf32> to vector<16x32xf32>
    %67 = vector.extract_strided_slice %65 {offsets = [0, 0], sizes = [16, 32], strides = [1, 1]} : vector<16x96xf32> to vector<16x32xf32>
    %68 = arith.addf %66, %67 : vector<16x32xf32>
    %69 = math.absf %68 : vector<16x32xf32>
    %cst_36 = arith.constant 0.000000e+00 : f32
    %70 = vector.broadcast %cst_36 : f32 to vector<16x32xf32>
    %71 = arith.subf %70, %69 : vector<16x32xf32>
    %72 = math.exp %71 : vector<16x32xf32>
    %cst_37 = arith.constant 0.000000e+00 : f32
    %73 = vector.broadcast %cst_37 : f32 to vector<16x32xf32>
    %74 = arith.cmpf oge, %68, %73 : vector<16x32xf32>
    %cst_38 = arith.constant 1.000000e+00 : f32
    %75 = vector.broadcast %cst_38 : f32 to vector<16x32xf32>
    %76 = arith.select %74, %75, %72 : vector<16x32xi1>, vector<16x32xf32>
    %cst_39 = arith.constant 1.000000e+00 : f32
    %77 = vector.broadcast %cst_39 : f32 to vector<16x32xf32>
    %78 = arith.addf %77, %72 : vector<16x32xf32>
    %79 = arith.divf %76, %78 : vector<16x32xf32>
    %80 = vector.extract_strided_slice %64 {offsets = [0, 32], sizes = [16, 32], strides = [1, 1]} : vector<16x96xf32> to vector<16x32xf32>
    %81 = vector.extract_strided_slice %65 {offsets = [0, 32], sizes = [16, 32], strides = [1, 1]} : vector<16x96xf32> to vector<16x32xf32>
    %82 = arith.addf %80, %81 : vector<16x32xf32>
    %83 = math.absf %82 : vector<16x32xf32>
    %cst_40 = arith.constant 0.000000e+00 : f32
    %84 = vector.broadcast %cst_40 : f32 to vector<16x32xf32>
    %85 = arith.subf %84, %83 : vector<16x32xf32>
    %86 = math.exp %85 : vector<16x32xf32>
    %cst_41 = arith.constant 0.000000e+00 : f32
    %87 = vector.broadcast %cst_41 : f32 to vector<16x32xf32>
    %88 = arith.cmpf oge, %82, %87 : vector<16x32xf32>
    %cst_42 = arith.constant 1.000000e+00 : f32
    %89 = vector.broadcast %cst_42 : f32 to vector<16x32xf32>
    %90 = arith.select %88, %89, %86 : vector<16x32xi1>, vector<16x32xf32>
    %cst_43 = arith.constant 1.000000e+00 : f32
    %91 = vector.broadcast %cst_43 : f32 to vector<16x32xf32>
    %92 = arith.addf %91, %86 : vector<16x32xf32>
    %93 = arith.divf %90, %92 : vector<16x32xf32>
    %94 = vector.extract_strided_slice %64 {offsets = [0, 64], sizes = [16, 32], strides = [1, 1]} : vector<16x96xf32> to vector<16x32xf32>
    %95 = vector.extract_strided_slice %65 {offsets = [0, 64], sizes = [16, 32], strides = [1, 1]} : vector<16x96xf32> to vector<16x32xf32>
    %96 = vector.broadcast %9 : vector<1x32xf32> to vector<16x32xf32>
    %97 = arith.addf %95, %96 : vector<16x32xf32>
    %98 = arith.mulf %79, %97 : vector<16x32xf32>
    %99 = arith.addf %94, %98 : vector<16x32xf32>
    %100 = math.tanh %99 : vector<16x32xf32>
    %cst_44 = arith.constant 1.000000e+00 : f32
    %101 = vector.broadcast %cst_44 : f32 to vector<16x32xf32>
    %102 = arith.subf %101, %93 : vector<16x32xf32>
    %103 = arith.mulf %102, %100 : vector<16x32xf32>
    %104 = arith.mulf %93, %57 : vector<16x32xf32>
    %105 = arith.addf %103, %104 : vector<16x32xf32>
    %c2 = arith.constant 2 : index
    %c0_45 = arith.constant 0 : index
    %c0_46 = arith.constant 0 : index
    %106 = vector.load %arg4[%c2, %c0_45, %c0_46] : memref<3x32x32xf32, #tpu.memory_space<vmem>>, vector<1x32x32xf32>
    %107 = vector.shape_cast %106 : vector<1x32x32xf32> to vector<32x32xf32>
    %cst_47 = arith.constant dense<0.000000e+00> : vector<16x32xf32>
    %108 = tpu.matmul %105, %107, %cst_47 {dimension_numbers = #tpu.dot_dimension_numbers<[1], [0], [0], [1], [0, 0, 1, 1], [], []>} : vector<16x32xf32>, vector<32x32xf32>, vector<16x32xf32> -> vector<16x32xf32>
    %cst_48 = arith.constant dense<0.000000e+00> : vector<16x32xf32>
    %109 = tpu.matmul %5, %108, %cst_48 {dimension_numbers = #tpu.dot_dimension_numbers<[1], [0], [0], [1], [0, 0, 1, 1], [], []>} : vector<16x16xf32>, vector<16x32xf32>, vector<16x32xf32> -> vector<16x32xf32>
    %cst_49 = arith.constant dense<0.000000e+00> : vector<16x96xf32>
    %110 = tpu.matmul %109, %6, %cst_49 {dimension_numbers = #tpu.dot_dimension_numbers<[1], [0], [0], [1], [0, 0, 1, 1], [], []>} : vector<16x32xf32>, vector<32x96xf32>, vector<16x96xf32> -> vector<16x96xf32>
    %111 = vector.broadcast %8 : vector<1x96xf32> to vector<16x96xf32>
    %112 = arith.addf %110, %111 : vector<16x96xf32>
    %cst_50 = arith.constant dense<0.000000e+00> : vector<16x96xf32>
    %113 = tpu.matmul %105, %7, %cst_50 {dimension_numbers = #tpu.dot_dimension_numbers<[1], [0], [0], [1], [0, 0, 1, 1], [], []>} : vector<16x32xf32>, vector<32x96xf32>, vector<16x96xf32> -> vector<16x96xf32>
    %114 = vector.extract_strided_slice %112 {offsets = [0, 0], sizes = [16, 32], strides = [1, 1]} : vector<16x96xf32> to vector<16x32xf32>
    %115 = vector.extract_strided_slice %113 {offsets = [0, 0], sizes = [16, 32], strides = [1, 1]} : vector<16x96xf32> to vector<16x32xf32>
    %116 = arith.addf %114, %115 : vector<16x32xf32>
    %117 = math.absf %116 : vector<16x32xf32>
    %cst_51 = arith.constant 0.000000e+00 : f32
    %118 = vector.broadcast %cst_51 : f32 to vector<16x32xf32>
    %119 = arith.subf %118, %117 : vector<16x32xf32>
    %120 = math.exp %119 : vector<16x32xf32>
    %cst_52 = arith.constant 0.000000e+00 : f32
    %121 = vector.broadcast %cst_52 : f32 to vector<16x32xf32>
    %122 = arith.cmpf oge, %116, %121 : vector<16x32xf32>
    %cst_53 = arith.constant 1.000000e+00 : f32
    %123 = vector.broadcast %cst_53 : f32 to vector<16x32xf32>
    %124 = arith.select %122, %123, %120 : vector<16x32xi1>, vector<16x32xf32>
    %cst_54 = arith.constant 1.000000e+00 : f32
    %125 = vector.broadcast %cst_54 : f32 to vector<16x32xf32>
    %126 = arith.addf %125, %120 : vector<16x32xf32>
    %127 = arith.divf %124, %126 : vector<16x32xf32>
    %128 = vector.extract_strided_slice %112 {offsets = [0, 32], sizes = [16, 32], strides = [1, 1]} : vector<16x96xf32> to vector<16x32xf32>
    %129 = vector.extract_strided_slice %113 {offsets = [0, 32], sizes = [16, 32], strides = [1, 1]} : vector<16x96xf32> to vector<16x32xf32>
    %130 = arith.addf %128, %129 : vector<16x32xf32>
    %131 = math.absf %130 : vector<16x32xf32>
    %cst_55 = arith.constant 0.000000e+00 : f32
    %132 = vector.broadcast %cst_55 : f32 to vector<16x32xf32>
    %133 = arith.subf %132, %131 : vector<16x32xf32>
    %134 = math.exp %133 : vector<16x32xf32>
    %cst_56 = arith.constant 0.000000e+00 : f32
    %135 = vector.broadcast %cst_56 : f32 to vector<16x32xf32>
    %136 = arith.cmpf oge, %130, %135 : vector<16x32xf32>
    %cst_57 = arith.constant 1.000000e+00 : f32
    %137 = vector.broadcast %cst_57 : f32 to vector<16x32xf32>
    %138 = arith.select %136, %137, %134 : vector<16x32xi1>, vector<16x32xf32>
    %cst_58 = arith.constant 1.000000e+00 : f32
    %139 = vector.broadcast %cst_58 : f32 to vector<16x32xf32>
    %140 = arith.addf %139, %134 : vector<16x32xf32>
    %141 = arith.divf %138, %140 : vector<16x32xf32>
    %142 = vector.extract_strided_slice %112 {offsets = [0, 64], sizes = [16, 32], strides = [1, 1]} : vector<16x96xf32> to vector<16x32xf32>
    %143 = vector.extract_strided_slice %113 {offsets = [0, 64], sizes = [16, 32], strides = [1, 1]} : vector<16x96xf32> to vector<16x32xf32>
    %144 = vector.broadcast %9 : vector<1x32xf32> to vector<16x32xf32>
    %145 = arith.addf %143, %144 : vector<16x32xf32>
    %146 = arith.mulf %127, %145 : vector<16x32xf32>
    %147 = arith.addf %142, %146 : vector<16x32xf32>
    %148 = math.tanh %147 : vector<16x32xf32>
    %cst_59 = arith.constant 1.000000e+00 : f32
    %149 = vector.broadcast %cst_59 : f32 to vector<16x32xf32>
    %150 = arith.subf %149, %141 : vector<16x32xf32>
    %151 = arith.mulf %150, %148 : vector<16x32xf32>
    %152 = arith.mulf %141, %105 : vector<16x32xf32>
    %153 = arith.addf %151, %152 : vector<16x32xf32>
    %cst_60 = arith.constant 0.000000e+00 : f32
    %154 = vector.broadcast %cst_60 : f32 to vector<16x32xf32>
    %155 = arith.maximumf %153, %154 : vector<16x32xf32>
    %c0_61 = arith.constant 0 : index
    %c0_62 = arith.constant 0 : index
    %156 = vector.load %arg3[%c0_61, %c0_62] : memref<2x16xf32, #tpu.memory_space<vmem>>, vector<2x16xf32>
    %cst_63 = arith.constant dense<0.000000e+00> : vector<2x32xf32>
    %157 = tpu.matmul %156, %155, %cst_63 {dimension_numbers = #tpu.dot_dimension_numbers<[1], [0], [0], [1], [0, 0, 1, 1], [], []>} : vector<2x16xf32>, vector<16x32xf32>, vector<2x32xf32> -> vector<2x32xf32>
    %c0_64 = arith.constant 0 : index
    %c0_65 = arith.constant 0 : index
    %158 = vector.load %arg9[%c0_64, %c0_65] : memref<32x32xf32, #tpu.memory_space<vmem>>, vector<32x32xf32>
    %cst_66 = arith.constant dense<0.000000e+00> : vector<2x32xf32>
    %159 = tpu.matmul %157, %158, %cst_66 {dimension_numbers = #tpu.dot_dimension_numbers<[1], [0], [0], [1], [0, 0, 1, 1], [], []>} : vector<2x32xf32>, vector<32x32xf32>, vector<2x32xf32> -> vector<2x32xf32>
    %c0_67 = arith.constant 0 : index
    %c0_68 = arith.constant 0 : index
    %160 = vector.load %arg10[%c0_67, %c0_68] : memref<1x32xf32, #tpu.memory_space<vmem>>, vector<1x32xf32>
    %161 = vector.broadcast %160 : vector<1x32xf32> to vector<2x32xf32>
    %162 = arith.addf %159, %161 : vector<2x32xf32>
    %cst_69 = arith.constant 0.000000e+00 : f32
    %163 = vector.broadcast %cst_69 : f32 to vector<2x32xf32>
    %164 = arith.maximumf %162, %163 : vector<2x32xf32>
    %c0_70 = arith.constant 0 : index
    %c0_71 = arith.constant 0 : index
    %165 = vector.load %arg11[%c0_70, %c0_71] : memref<32x1xf32, #tpu.memory_space<vmem>>, vector<32x1xf32>
    %cst_72 = arith.constant dense<0.000000e+00> : vector<2x1xf32>
    %166 = tpu.matmul %164, %165, %cst_72 {dimension_numbers = #tpu.dot_dimension_numbers<[1], [0], [0], [1], [0, 0, 1, 1], [], []>} : vector<2x32xf32>, vector<32x1xf32>, vector<2x1xf32> -> vector<2x1xf32>
    %c0_73 = arith.constant 0 : index
    %c0_74 = arith.constant 0 : index
    %167 = vector.load %arg12[%c0_73, %c0_74] : memref<1x1xf32, #tpu.memory_space<vmem>>, vector<1x1xf32>
    %168 = vector.broadcast %167 : vector<1x1xf32> to vector<2x1xf32>
    %169 = arith.addf %166, %168 : vector<2x1xf32>
    %cst_75 = arith.constant 0.000000e+00 : f32
    %170 = vector.broadcast %cst_75 : f32 to vector<2x1xf32>
    %171 = arith.maximumf %169, %170 : vector<2x1xf32>
    %172 = math.absf %169 : vector<2x1xf32>
    %cst_76 = arith.constant 0.000000e+00 : f32
    %173 = vector.broadcast %cst_76 : f32 to vector<2x1xf32>
    %174 = arith.subf %173, %172 : vector<2x1xf32>
    %175 = math.exp %174 : vector<2x1xf32>
    %cst_77 = arith.constant 1.000000e+00 : f32
    %176 = vector.broadcast %cst_77 : f32 to vector<2x1xf32>
    %177 = arith.addf %176, %175 : vector<2x1xf32>
    %178 = math.log %177 : vector<2x1xf32>
    %179 = arith.addf %171, %178 : vector<2x1xf32>
    %c0_78 = arith.constant 0 : index
    %c0_79 = arith.constant 0 : index
    %180 = vector.load %arg13[%c0_78, %c0_79] : memref<2x1xf32, #tpu.memory_space<vmem>>, vector<2x1xf32>
    tpu.vector_store %arg13[%c0_78, %c0_79], %179 {strides = array<i32>} : memref<2x1xf32, #tpu.memory_space<vmem>>, vector<2x1xf32>,
    return
  }
}

</mosaic_0001>

<llo_original>
// kernel: pore_graph_gnn_forward.1
$region0: #{pore_graph_gnn_forward.1}
  #allocation0 [shape = 'u32[]', space=smem, size = 0x4, offset = 0x4, fixed_abs, tag = 'smem constant byte address 0x4 - core index']
  #allocation1 [shape = 'u32[144,128]{1,0:T(1,128)}', space=vmem, size = 0x12000, scoped, tag = 'internal scratch']
  #allocation2 [shape = 'f32[1,1]{1,0:T(1,128)S(1)}', space=vmem, size = 0x200, scoped, tag = 'scoped memory for pore_graph_gnn_forward.1']
  %s0 = inlined_call_operand.vmem [shape: f32[16,10], index: 0, kind: input, shape index: {}]
  %s1 = inlined_call_operand.vmem [shape: f32[10,32], index: 1, kind: input, shape index: {}]
  %s2 = inlined_call_operand.hbm [shape: f32[16,16], index: 2, kind: input, shape index: {}]
  %s3 = inlined_call_operand.vmem [shape: f32[2,16], index: 3, kind: input, shape index: {}]
  %s4 = inlined_call_operand.vmem [shape: f32[3,32,32], index: 4, kind: input, shape index: {}]
  %s5 = inlined_call_operand.vmem [shape: f32[32,96], index: 5, kind: input, shape index: {}]
  %s6 = inlined_call_operand.vmem [shape: f32[32,96], index: 6, kind: input, shape index: {}]
  %s7 = inlined_call_operand.vmem [shape: f32[1,96], index: 7, kind: input, shape index: {}]
  %s8 = inlined_call_operand.vmem [shape: f32[1,32], index: 8, kind: input, shape index: {}]
  %s9 = inlined_call_operand.vmem [shape: f32[32,32], index: 9, kind: input, shape index: {}]
  %s10 = inlined_call_operand.vmem [shape: f32[1,32], index: 10, kind: input, shape index: {}]
  %s11 = inlined_call_operand.vmem [shape: f32[32,1], index: 11, kind: input, shape index: {}]
  %s12 = inlined_call_operand.<no memory space> [shape: f32[1,1], index: 12, kind: input, shape index: {}]
  %s13 = inlined_call_operand.vmem [shape: f32[2,1], index: 13, kind: output, shape index: {}]
  %s14 = sld [smem:[#allocation0]]
  $region66: #{pore_graph_gnn_forward.1} parent=0
    _
  %s16 = ssub.s32 1, %s14
  %s17 = scalar_select 0, %s16, %s14
  %v18 = vstv %s12
  %19 = vst [vmem:[#allocation2] sm:$0x1] %v18
  $region1: #{pore_graph_gnn_forward.1} parent=0
    #allocation3 [shape = 'u8[8192]{0}', space=vmem, size = 0x2000, scoped, tag = 'input window, operand 2, single buffered']
    #allocation4 [shape = 's32[1]{0}', space=sflag, size = 0x4, scoped, tag = 'scoped memory for pore_graph_gnn_forward.1']
    %20 = vsyncpa [#allocation4], 0
    // Predicated region
    $region2: #{pore_graph_gnn_forward.1} parent=1 // pred_check
      _
    $region3: #{pore_graph_gnn_forward.1} parent=1 // pred_check_branch
      %22 = sbr.rel (0) target = $region5
    $region4: #{pore_graph_gnn_forward.1} parent=1 // pred_region
      _
    $region5: #{pore_graph_gnn_forward.1} parent=1 // pred_fallthru
      _
    // Predicated region
    $region6: #{pore_graph_gnn_forward.1} parent=1 // pred_check
      _
    $region7: #{pore_graph_gnn_forward.1} parent=1 // pred_check_branch
      %24 = sbr.rel (0) target = $region9
    $region8: #{pore_graph_gnn_forward.1} parent=1 // pred_region
      _
    $region9: #{pore_graph_gnn_forward.1} parent=1 // pred_fallthru
      _
    // Predicated region
    $region10: #{pore_graph_gnn_forward.1} parent=1 // pred_check
      _
    $region11: #{pore_graph_gnn_forward.1} parent=1 // pred_check_branch
      %26 = sbr.rel (0) target = $region13
    $region12: #{pore_graph_gnn_forward.1} parent=1 // pred_region
      %s28 = ssub.s32 256, 256
      %29 = vsyncadd [#allocation4], %s28
      %s30 = sshll.u32 [#allocation3], 4
      %s31 = int_to_ptr.vmem [resolvable:$true] %s30
      %36 = dma.hbm_to_vmem [thread:$0]  %s2, 256, %s31, [#allocation4], 128, 128, 8
    $region13: #{pore_graph_gnn_forward.1} parent=1 // pred_fallthru
      _
    // Predicated region
    $region14: #{pore_graph_gnn_forward.1} parent=1 // pred_check
      _
    $region15: #{pore_graph_gnn_forward.1} parent=1 // pred_check_branch
      %38 = sbr.rel (0) target = $region17
    $region16: #{pore_graph_gnn_forward.1} parent=1 // pred_region
      _
    $region17: #{pore_graph_gnn_forward.1} parent=1 // pred_fallthru
      _
    // Predicated region
    $region18: #{pore_graph_gnn_forward.1} parent=1 // pred_check
      _
    $region19: #{pore_graph_gnn_forward.1} parent=1 // pred_check_branch
      %40 = sbr.rel (0) target = $region21
    $region20: #{pore_graph_gnn_forward.1} parent=1 // pred_region
      _
    $region21: #{pore_graph_gnn_forward.1} parent=1 // pred_fallthru
      _
    // Predicated region
    $region22: #{pore_graph_gnn_forward.1} parent=1 // pred_check
      _
    $region23: #{pore_graph_gnn_forward.1} parent=1 // pred_check_branch
      %42 = sbr.rel (0) target = $region25
    $region24: #{pore_graph_gnn_forward.1} parent=1 // pred_region
      _
    $region25: #{pore_graph_gnn_forward.1} parent=1 // pred_fallthru
      _
    // Predicated region
    $region26: #{pore_graph_gnn_forward.1} parent=1 // pred_check
      _
    $region27: #{pore_graph_gnn_forward.1} parent=1 // pred_check_branch
      %44 = sbr.rel (0) target = $region29
    $region28: #{pore_graph_gnn_forward.1} parent=1 // pred_region
      _
    $region29: #{pore_graph_gnn_forward.1} parent=1 // pred_fallthru
      _
    // Predicated region
    $region30: #{pore_graph_gnn_forward.1} parent=1 // pred_check
      _
    $region31: #{pore_graph_gnn_forward.1} parent=1 // pred_check_branch
      %46 = sbr.rel (0) target = $region33
    $region32: #{pore_graph_gnn_forward.1} parent=1 // pred_region
      _
    $region33: #{pore_graph_gnn_forward.1} parent=1 // pred_fallthru
      _
    // Predicated region
    $region34: #{pore_graph_gnn_forward.1} parent=1 // pred_check
      _
    $region35: #{pore_graph_gnn_forward.1} parent=1 // pred_check_branch
      %48 = sbr.rel (0) target = $region37
    $region36: #{pore_graph_gnn_forward.1} parent=1 // pred_region
      _
    $region37: #{pore_graph_gnn_forward.1} parent=1 // pred_fallthru
      _
    // Predicated region
    $region38: #{pore_graph_gnn_forward.1} parent=1 // pred_check
      _
    $region39: #{pore_graph_gnn_forward.1} parent=1 // pred_check_branch
      %50 = sbr.rel (0) target = $region41
    $region40: #{pore_graph_gnn_forward.1} parent=1 // pred_region
      _
    $region41: #{pore_graph_gnn_forward.1} parent=1 // pred_fallthru
      _
    // Predicated region
    $region42: #{pore_graph_gnn_forward.1} parent=1 // pred_check
      _
    $region43: #{pore_graph_gnn_forward.1} parent=1 // pred_check_branch
      %52 = sbr.rel (0) target = $region45
    $region44: #{pore_graph_gnn_forward.1} parent=1 // pred_region
      _
    $region45: #{pore_graph_gnn_forward.1} parent=1 // pred_fallthru
      _
    // Predicated region
    $region46: #{pore_graph_gnn_forward.1} parent=1 // pred_check
      _
    $region47: #{pore_graph_gnn_forward.1} parent=1 // pred_check_branch
      %54 = sbr.rel (0) target = $region49
    $region48: #{pore_graph_gnn_forward.1} parent=1 // pred_region
      _
    $region49: #{pore_graph_gnn_forward.1} parent=1 // pred_fallthru
      _
    // Predicated region
    $region50: #{pore_graph_gnn_forward.1} parent=1 // pred_check
      _
    $region51: #{pore_graph_gnn_forward.1} parent=1 // pred_check_branch
      %56 = sbr.rel (0) target = $region53
    $region52: #{pore_graph_gnn_forward.1} parent=1 // pred_region
      _
    $region53: #{pore_graph_gnn_forward.1} parent=1 // pred_fallthru
      _
    // Predicated region
    $region54: #{pore_graph_gnn_forward.1} parent=1 // pred_check
      _
    $region55: #{pore_graph_gnn_forward.1} parent=1 // pred_check_branch
      %58 = sbr.rel (0) target = $region57
    $region56: #{pore_graph_gnn_forward.1} parent=1 // pred_region
      %59 = dma.done [#allocation4], 256
    $region57: #{pore_graph_gnn_forward.1} parent=1 // pred_fallthru
      _
    %v60 = vld [vmem:[%s0] sm:$0xff]
    %v61 = vld [vmem:[%s0 + $0x8] sm:$0xff]
    %v62 = vld [vmem:[%s1] sm:$0xff]
    %v63 = vld [vmem:[%s1 + $0x8] sm:$0x3]
    %vm64 = vcmask 80896
    %v66 = vsel %vm64, %v60, 0
    %v69 = vsel %vm64, %v61, 0
    %vm71 = vcmask 1041408
    %v73 = vsel %vm71, %v63, 0
    %75 = vmatprep.subr.mxu0 0.0
    %76 = vmatpush1.msra.mxu0 %v62
    %77 = vmatprep.subr.mxu0 0.0
    %78 = vmatpush1.msra.mxu0 %v73
    %79 = vmatprep.subr.mxu0 0.0
    %80 = vmatpush1.msra.mxu0 0.0
    %81 = vmatprep.subr.mxu0 0.0
    %82 = vmatpush1.msra.mxu0 0.0
    %83 = vmatprep.subr.mxu0 0.0
    %84 = vmatpush1.msra.mxu0 0.0
    %85 = vmatprep.subr.mxu0 0.0
    %86 = vmatpush1.msra.mxu0 0.0
    %87 = vmatprep.subr.mxu0 0.0
    %88 = vmatpush1.msra.mxu0 0.0
    %89 = vmatprep.subr.mxu0 0.0
    %90 = vmatpush1.msra.mxu0 0.0
    %91 = vmatprep.subr.mxu0 0.0
    %92 = vmatpush1.msra.mxu0 0.0
    %93 = vmatprep.subr.mxu0 0.0
    %94 = vmatpush1.msra.mxu0 0.0
    %95 = vmatprep.subr.mxu0 0.0
    %96 = vmatpush1.msra.mxu0 0.0
    %97 = vmatprep.subr.mxu0 0.0
    %98 = vmatpush1.msra.mxu0 0.0
    %99 = vmatprep.subr.mxu0 0.0
    %100 = vmatpush1.msra.mxu0 0.0
    %101 = vmatprep.subr.mxu0 0.0
    %102 = vmatpush1.msra.mxu0 0.0
    %103 = vmatprep.subr.mxu0 0.0
    %104 = vmatpush1.msra.mxu0 0.0
    %105 = vmatprep.subr.mxu0 0.0
    %106 = vmatpush1.msra.mxu0 0.0
    %107 = vmatprep.subr.mxu0 0.0
    %108 = vmatpush1.msra.mxu0 0.0
    %109 = vmatprep.subr.mxu0 0.0
    %110 = vmatpush1.msra.mxu0 0.0
    %111 = vmatprep.subr.mxu0 0.0
    %112 = vmatpush1.msra.mxu0 0.0
    %113 = vmatprep.subr.mxu0 0.0
    %114 = vmatpush1.msra.mxu0 0.0
    %115 = vmatprep.subr.mxu0 0.0
    %116 = vmatpush1.msra.mxu0 0.0
    %117 = vmatprep.subr.mxu0 0.0
    %118 = vmatpush1.msra.mxu0 0.0
    %119 = vmatprep.subr.mxu0 0.0
    %120 = vmatpush1.msra.mxu0 0.0
    %121 = vmatprep.subr.mxu0 0.0
    %122 = vmatpush1.msra.mxu0 0.0
    %123 = vmatprep.subr.mxu0 0.0
    %124 = vmatpush1.msra.mxu0 0.0
    %125 = vmatprep.subr.mxu0 0.0
    %126 = vmatpush1.msra.mxu0 0.0
    %127 = vmatprep.subr.mxu0 0.0
    %128 = vmatpush1.msra.mxu0 0.0
    %129 = vmatprep.subr.mxu0 0.0
    %130 = vmatpush1.msra.mxu0 0.0
    %131 = vmatprep.subr.mxu0 0.0
    %132 = vmatpush1.msra.mxu0 0.0
    %133 = vmatprep.subr.mxu0 0.0
    %134 = vmatpush1.msra.mxu0 0.0
    %135 = vmatprep.subr.mxu0 0.0
    %136 = vmatpush1.msra.mxu0 0.0
    %137 = vmatprep.subr.mxu0 0.0
    %138 = vmatpush1.msra.mxu0 0.0
    %139 = vmatprep.mubr.f32.mxu0 0.0
    %140 = vmatmul.mubr.f32.gmra.mrb[0].mxu0 %v66
    %v141 = vpop.f32.mrb[0].mxu0
    %v142 = vadd.f32 0.0, %v141
    %v143 = vpop.f32.mrb[0].mxu0
    %144 = vmatprep.mubr.f32.mxu0 0.0
    %145 = vmatmul.mubr.f32.gmra.mrb[0].mxu0 %v69
    %v146 = vpop.f32.mrb[0].mxu0
    %v147 = vadd.f32 0.0, %v146
    %v148 = vpop.f32.mrb[0].mxu0
    %149 = vdwg.mxu0
    %v150 = vmax.f32 %v142, 0.0
    %v151 = vmax.f32 %v147, 0.0
    %v152 = vld [vmem:[#allocation3] sm:$0xff]
    %v153 = vld [vmem:[#allocation3 + $0x8] sm:$0xff]
    %v154 = vld [vmem:[%s5] sm:$0xff]
    %v155 = vld [vmem:[%s5 + $0x8] sm:$0xff]
    %v156 = vld [vmem:[%s5 + $0x10] sm:$0xff]
    %v157 = vld [vmem:[%s5 + $0x18] sm:$0xff]
    %v158 = vld [vmem:[%s6] sm:$0xff]
    %v159 = vld [vmem:[%s6 + $0x8] sm:$0xff]
    %v160 = vld [vmem:[%s6 + $0x10] sm:$0xff]
    %v161 = vld [vmem:[%s6 + $0x18] sm:$0xff]
    %v162 = vld [vmem:[%s7] sm:$0x1]
    %v163 = vld [vmem:[%s8] sm:$0x1]
    %v164 = vld [vmem:[%s4] sm:$0xff]
    %v165 = vld [vmem:[%s4 + $0x8] sm:$0xff]
    %v166 = vld [vmem:[%s4 + $0x10] sm:$0xff]
    %v167 = vld [vmem:[%s4 + $0x18] sm:$0xff]
    %vm168 = vcmask 261120
    %v170 = vsel %vm168, %v150, 0
    %v173 = vsel %vm168, %v151, 0
    %175 = vmatprep.subr.mxu0 0.0
    %176 = vmatpush1.msra.mxu0 %v164
    %177 = vmatprep.subr.mxu0 0.0
    %178 = vmatpush1.msra.mxu0 %v165
    %179 = vmatprep.subr.mxu0 0.0
    %180 = vmatpush1.msra.mxu0 %v166
    %181 = vmatprep.subr.mxu0 0.0
    %182 = vmatpush1.msra.mxu0 %v167
    %183 = vmatprep.subr.mxu0 0.0
    %184 = vmatpush1.msra.mxu0 0.0
    %185 = vmatprep.subr.mxu0 0.0
    %186 = vmatpush1.msra.mxu0 0.0
    %187 = vmatprep.subr.mxu0 0.0
    %188 = vmatpush1.msra.mxu0 0.0
    %189 = vmatprep.subr.mxu0 0.0
    %190 = vmatpush1.msra.mxu0 0.0
    %191 = vmatprep.subr.mxu0 0.0
    %192 = vmatpush1.msra.mxu0 0.0
    %193 = vmatprep.subr.mxu0 0.0
    %194 = vmatpush1.msra.mxu0 0.0
    %195 = vmatprep.subr.mxu0 0.0
    %196 = vmatpush1.msra.mxu0 0.0
    %197 = vmatprep.subr.mxu0 0.0
    %198 = vmatpush1.msra.mxu0 0.0
    %199 = vmatprep.subr.mxu0 0.0
    %200 = vmatpush1.msra.mxu0 0.0
    %201 = vmatprep.subr.mxu0 0.0
    %202 = vmatpush1.msra.mxu0 0.0
    %203 = vmatprep.subr.mxu0 0.0
    %204 = vmatpush1.msra.mxu0 0.0
    %205 = vmatprep.subr.mxu0 0.0
    %206 = vmatpush1.msra.mxu0 0.0
    %207 = vmatprep.subr.mxu0 0.0
    %208 = vmatpush1.msra.mxu0 0.0
    %209 = vmatprep.subr.mxu0 0.0
    %210 = vmatpush1.msra.mxu0 0.0
    %211 = vmatprep.subr.mxu0 0.0
    %212 = vmatpush1.msra.mxu0 0.0
    %213 = vmatprep.subr.mxu0 0.0
    %214 = vmatpush1.msra.mxu0 0.0
    %215 = vmatprep.subr.mxu0 0.0
    %216 = vmatpush1.msra.mxu0 0.0
    %217 = vmatprep.subr.mxu0 0.0
    %218 = vmatpush1.msra.mxu0 0.0
    %219 = vmatprep.subr.mxu0 0.0
    %220 = vmatpush1.msra.mxu0 0.0
    %221 = vmatprep.subr.mxu0 0.0
    %222 = vmatpush1.msra.mxu0 0.0
    %223 = vmatprep.subr.mxu0 0.0
    %224 = vmatpush1.msra.mxu0 0.0
    %225 = vmatprep.subr.mxu0 0.0
    %226 = vmatpush1.msra.mxu0 0.0
    %227 = vmatprep.subr.mxu0 0.0
    %228 = vmatpush1.msra.mxu0 0.0
    %229 = vmatprep.subr.mxu0 0.0
    %230 = vmatpush1.msra.mxu0 0.0
    %231 = vmatprep.subr.mxu0 0.0
    %232 = vmatpush1.msra.mxu0 0.0
    %233 = vmatprep.subr.mxu0 0.0
    %234 = vmatpush1.msra.mxu0 0.0
    %235 = vmatprep.subr.mxu0 0.0
    %236 = vmatpush1.msra.mxu0 0.0
    %237 = vmatprep.subr.mxu0 0.0
    %238 = vmatpush1.msra.mxu0 0.0
    %239 = vmatprep.mubr.f32.mxu0 0.0
    %240 = vmatmul.mubr.f32.gmra.mrb[0].mxu0 %v170
    %v241 = vpop.f32.mrb[0].mxu0
    %v242 = vadd.f32 0.0, %v241
    %v243 = vpop.f32.mrb[0].mxu0
    %244 = vmatprep.mubr.f32.mxu0 0.0
    %245 = vmatmul.mubr.f32.gmra.mrb[0].mxu0 %v173
    %v246 = vpop.f32.mrb[0].mxu0
    %v247 = vadd.f32 0.0, %v246
    %v248 = vpop.f32.mrb[0].mxu0
    %249 = vdwg.mxu0
    %vm250 = vcmask 130048
    %v252 = vsel %vm250, %v152, 0
    %v255 = vsel %vm250, %v153, 0
    %257 = vmatprep.subr.mxu0 0.0
    %258 = vmatpush1.msra.mxu0 %v242
    %259 = vmatprep.subr.mxu0 0.0
    %260 = vmatpush1.msra.mxu0 %v247
    %261 = vmatprep.subr.mxu0 0.0
    %262 = vmatpush1.msra.mxu0 0.0
    %263 = vmatprep.subr.mxu0 0.0
    %264 = vmatpush1.msra.mxu0 0.0
    %265 = vmatprep.subr.mxu0 0.0
    %266 = vmatpush1.msra.mxu0 0.0
    %267 = vmatprep.subr.mxu0 0.0
    %268 = vmatpush1.msra.mxu0 0.0
    %269 = vmatprep.subr.mxu0 0.0
    %270 = vmatpush1.msra.mxu0 0.0
    %271 = vmatprep.subr.mxu0 0.0
    %272 = vmatpush1.msra.mxu0 0.0
    %273 = vmatprep.subr.mxu0 0.0
    %274 = vmatpush1.msra.mxu0 0.0
    %275 = vmatprep.subr.mxu0 0.0
    %276 = vmatpush1.msra.mxu0 0.0
    %277 = vmatprep.subr.mxu0 0.0
    %278 = vmatpush1.msra.mxu0 0.0
    %279 = vmatprep.subr.mxu0 0.0
    %280 = vmatpush1.msra.mxu0 0.0
    %281 = vmatprep.subr.mxu0 0.0
    %282 = vmatpush1.msra.mxu0 0.0
    %283 = vmatprep.subr.mxu0 0.0
    %284 = vmatpush1.msra.mxu0 0.0
    %285 = vmatprep.subr.mxu0 0.0
    %286 = vmatpush1.msra.mxu0 0.0
    %287 = vmatprep.subr.mxu0 0.0
    %288 = vmatpush1.msra.mxu0 0.0
    %289 = vmatprep.subr.mxu0 0.0
    %290 = vmatpush1.msra.mxu0 0.0
    %291 = vmatprep.subr.mxu0 0.0
    %292 = vmatpush1.msra.mxu0 0.0
    %293 = vmatprep.subr.mxu0 0.0
    %294 = vmatpush1.msra.mxu0 0.0
    %295 = vmatprep.subr.mxu0 0.0
    %296 = vmatpush1.msra.mxu0 0.0
    %297 = vmatprep.subr.mxu0 0.0
    %298 = vmatpush1.msra.mxu0 0.0
    %299 = vmatprep.subr.mxu0 0.0
    %300 = vmatpush1.msra.mxu0 0.0
    %301 = vmatprep.subr.mxu0 0.0
    %302 = vmatpush1.msra.mxu0 0.0
    %303 = vmatprep.subr.mxu0 0.0
    %304 = vmatpush1.msra.mxu0 0.0
    %305 = vmatprep.subr.mxu0 0.0
    %306 = vmatpush1.msra.mxu0 0.0
    %307 = vmatprep.subr.mxu0 0.0
    %308 = vmatpush1.msra.mxu0 0.0
    %309 = vmatprep.subr.mxu0 0.0
    %310 = vmatpush1.msra.mxu0 0.0
    %311 = vmatprep.subr.mxu0 0.0
    %312 = vmatpush1.msra.mxu0 0.0
    %313 = vmatprep.subr.mxu0 0.0
    %314 = vmatpush1.msra.mxu0 0.0
    %315 = vmatprep.subr.mxu0 0.0
    %316 = vmatpush1.msra.mxu0 0.0
    %317 = vmatprep.subr.mxu0 0.0
    %318 = vmatpush1.msra.mxu0 0.0
    %319 = vmatprep.subr.mxu0 0.0
    %320 = vmatpush1.msra.mxu0 0.0
    %321 = vmatprep.mubr.f32.mxu0 0.0
    %322 = vmatmul.mubr.f32.gmra.mrb[0].mxu0 %v252
    %v323 = vpop.f32.mrb[0].mxu0
    %v324 = vadd.f32 0.0, %v323
    %v325 = vpop.f32.mrb[0].mxu0
    %326 = vmatprep.mubr.f32.mxu0 0.0
    %327 = vmatmul.mubr.f32.gmra.mrb[0].mxu0 %v255
    %v328 = vpop.f32.mrb[0].mxu0
    %v329 = vadd.f32 0.0, %v328
    %v330 = vpop.f32.mrb[0].mxu0
    %331 = vdwg.mxu0
    %v333 = vlaneseq
    %v334 = vshrl.u32 %v333, 7
    %v335 = vsub.s32 0, %v334
    %v336 = vrot.slane %v162, %v335
    %v339 = vsel %vm168, %v324, 0
    %v342 = vsel %vm168, %v329, 0
    %344 = vmatprep.subr.mxu0 0.0
    %345 = vmatpush1.msra.mxu0 %v154
    %346 = vmatprep.subr.mxu0 0.0
    %347 = vmatpush1.msra.mxu0 %v155
    %348 = vmatprep.subr.mxu0 0.0
    %349 = vmatpush1.msra.mxu0 %v156
    %350 = vmatprep.subr.mxu0 0.0
    %351 = vmatpush1.msra.mxu0 %v157
    %352 = vmatprep.subr.mxu0 0.0
    %353 = vmatpush1.msra.mxu0 0.0
    %354 = vmatprep.subr.mxu0 0.0
    %355 = vmatpush1.msra.mxu0 0.0
    %356 = vmatprep.subr.mxu0 0.0
    %357 = vmatpush1.msra.mxu0 0.0
    %358 = vmatprep.subr.mxu0 0.0
    %359 = vmatpush1.msra.mxu0 0.0
    %360 = vmatprep.subr.mxu0 0.0
    %361 = vmatpush1.msra.mxu0 0.0
    %362 = vmatprep.subr.mxu0 0.0
    %363 = vmatpush1.msra.mxu0 0.0
    %364 = vmatprep.subr.mxu0 0.0
    %365 = vmatpush1.msra.mxu0 0.0
    %366 = vmatprep.subr.mxu0 0.0
    %367 = vmatpush1.msra.mxu0 0.0
    %368 = vmatprep.subr.mxu0 0.0
    %369 = vmatpush1.msra.mxu0 0.0
    %370 = vmatprep.subr.mxu0 0.0
    %371 = vmatpush1.msra.mxu0 0.0
    %372 = vmatprep.subr.mxu0 0.0
    %373 = vmatpush1.msra.mxu0 0.0
    %374 = vmatprep.subr.mxu0 0.0
    %375 = vmatpush1.msra.mxu0 0.0
    %376 = vmatprep.subr.mxu0 0.0
    %377 = vmatpush1.msra.mxu0 0.0
    %378 = vmatprep.subr.mxu0 0.0
    %379 = vmatpush1.msra.mxu0 0.0
    %380 = vmatprep.subr.mxu0 0.0
    %381 = vmatpush1.msra.mxu0 0.0
    %382 = vmatprep.subr.mxu0 0.0
    %383 = vmatpush1.msra.mxu0 0.0
    %384 = vmatprep.subr.mxu0 0.0
    %385 = vmatpush1.msra.mxu0 0.0
    %386 = vmatprep.subr.mxu0 0.0
    %387 = vmatpush1.msra.mxu0 0.0
    %388 = vmatprep.subr.mxu0 0.0
    %389 = vmatpush1.msra.mxu0 0.0
    %390 = vmatprep.subr.mxu0 0.0
    %391 = vmatpush1.msra.mxu0 0.0
    %392 = vmatprep.subr.mxu0 0.0
    %393 = vmatpush1.msra.mxu0 0.0
    %394 = vmatprep.subr.mxu0 0.0
    %395 = vmatpush1.msra.mxu0 0.0
    %396 = vmatprep.subr.mxu0 0.0
    %397 = vmatpush1.msra.mxu0 0.0
    %398 = vmatprep.subr.mxu0 0.0
    %399 = vmatpush1.msra.mxu0 0.0
    %400 = vmatprep.subr.mxu0 0.0
    %401 = vmatpush1.msra.mxu0 0.0
    %402 = vmatprep.subr.mxu0 0.0
    %403 = vmatpush1.msra.mxu0 0.0
    %404 = vmatprep.subr.mxu0 0.0
    %405 = vmatpush1.msra.mxu0 0.0
    %406 = vmatprep.subr.mxu0 0.0
    %407 = vmatpush1.msra.mxu0 0.0
    %408 = vmatprep.mubr.f32.mxu0 0.0
    %409 = vmatmul.mubr.f32.gmra.mrb[0].mxu0 %v339
    %v410 = vpop.f32.mrb[0].mxu0
    %v411 = vadd.f32 %v336, %v410
    %v412 = vpop.f32.mrb[0].mxu0
    %413 = vmatprep.mubr.f32.mxu0 0.0
    %414 = vmatmul.mubr.f32.gmra.mrb[0].mxu0 %v342
    %v415 = vpop.f32.mrb[0].mxu0
    %v416 = vadd.f32 %v336, %v415
    %v417 = vpop.f32.mrb[0].mxu0
    %418 = vdwg.mxu0
    %419 = vmatprep.subr.mxu0 0.0
    %420 = vmatpush1.msra.mxu0 %v158
    %421 = vmatprep.subr.mxu0 0.0
    %422 = vmatpush1.msra.mxu0 %v159
    %423 = vmatprep.subr.mxu0 0.0
    %424 = vmatpush1.msra.mxu0 %v160
    %425 = vmatprep.subr.mxu0 0.0
    %426 = vmatpush1.msra.mxu0 %v161
    %427 = vmatprep.subr.mxu0 0.0
    %428 = vmatpush1.msra.mxu0 0.0
    %429 = vmatprep.subr.mxu0 0.0
    %430 = vmatpush1.msra.mxu0 0.0
    %431 = vmatprep.subr.mxu0 0.0
    %432 = vmatpush1.msra.mxu0 0.0
    %433 = vmatprep.subr.mxu0 0.0
    %434 = vmatpush1.msra.mxu0 0.0
    %435 = vmatprep.subr.mxu0 0.0
    %436 = vmatpush1.msra.mxu0 0.0
    %437 = vmatprep.subr.mxu0 0.0
    %438 = vmatpush1.msra.mxu0 0.0
    %439 = vmatprep.subr.mxu0 0.0
    %440 = vmatpush1.msra.mxu0 0.0
    %441 = vmatprep.subr.mxu0 0.0
    %442 = vmatpush1.msra.mxu0 0.0
    %443 = vmatprep.subr.mxu0 0.0
    %444 = vmatpush1.msra.mxu0 0.0
    %445 = vmatprep.subr.mxu0 0.0
    %446 = vmatpush1.msra.mxu0 0.0
    %447 = vmatprep.subr.mxu0 0.0
    %448 = vmatpush1.msra.mxu0 0.0
    %449 = vmatprep.subr.mxu0 0.0
    %450 = vmatpush1.msra.mxu0 0.0
    %451 = vmatprep.subr.mxu0 0.0
    %452 = vmatpush1.msra.mxu0 0.0
    %453 = vmatprep.subr.mxu0 0.0
    %454 = vmatpush1.msra.mxu0 0.0
    %455 = vmatprep.subr.mxu0 0.0
    %456 = vmatpush1.msra.mxu0 0.0
    %457 = vmatprep.subr.mxu0 0.0
    %458 = vmatpush1.msra.mxu0 0.0
    %459 = vmatprep.subr.mxu0 0.0
    %460 = vmatpush1.msra.mxu0 0.0
    %461 = vmatprep.subr.mxu0 0.0
    %462 = vmatpush1.msra.mxu0 0.0
    %463 = vmatprep.subr.mxu0 0.0
    %464 = vmatpush1.msra.mxu0 0.0
    %465 = vmatprep.subr.mxu0 0.0
    %466 = vmatpush1.msra.mxu0 0.0
    %467 = vmatprep.subr.mxu0 0.0
    %468 = vmatpush1.msra.mxu0 0.0
    %469 = vmatprep.subr.mxu0 0.0
    %470 = vmatpush1.msra.mxu0 0.0
    %471 = vmatprep.subr.mxu0 0.0
    %472 = vmatpush1.msra.mxu0 0.0
    %473 = vmatprep.subr.mxu0 0.0
    %474 = vmatpush1.msra.mxu0 0.0
    %475 = vmatprep.subr.mxu0 0.0
    %476 = vmatpush1.msra.mxu0 0.0
    %477 = vmatprep.subr.mxu0 0.0
    %478 = vmatpush1.msra.mxu0 0.0
    %479 = vmatprep.subr.mxu0 0.0
    %480 = vmatpush1.msra.mxu0 0.0
    %481 = vmatprep.subr.mxu0 0.0
    %482 = vmatpush1.msra.mxu0 0.0
    %483 = vmatprep.mubr.f32.mxu0 0.0
    %484 = vmatmul.mubr.f32.gmra.mrb[0].mxu0 %v170
    %v485 = vpop.f32.mrb[0].mxu0
    %v486 = vadd.f32 0.0, %v485
    %v487 = vpop.f32.mrb[0].mxu0
    %488 = vmatprep.mubr.f32.mxu0 0.0
    %489 = vmatmul.mubr.f32.gmra.mrb[0].mxu0 %v173
    %v490 = vpop.f32.mrb[0].mxu0
    %v491 = vadd.f32 0.0, %v490
    %v492 = vpop.f32.mrb[0].mxu0
    %493 = vdwg.mxu0
    %v494 = vadd.f32 %v411, %v486
    %v495 = vadd.f32 %v416, %v491
    %v496 = vand.u32 2147483647, %v494
    %v497 = vand.u32 2147483647, %v495
    %v498 = vsub.f32 0.0, %v496
    %v499 = vsub.f32 0.0, %v497
    %v500 = vmul.f32 %v498, 1.442695
    %v501 = vpow.pop %v500
    %v502 = vmul.f32 %v499, 1.442695
    %v503 = vpow.pop %v502
    %vm504 = vcmp.ge.f32.partialorder %v494, 0.0
    %vm505 = vcmp.ge.f32.partialorder %v495, 0.0
    %v506 = vsel %vm504, 1.0, %v501
    %v507 = vsel %vm505, 1.0, %v503
    %v508 = vadd.f32 %v501, 1.0
    %v509 = vadd.f32 %v503, 1.0
    %v510 = vrcp.pop %v508
    %v511 = vmul.f32 %v506, %v510
    %v512 = vrcp.pop %v509
    %v513 = vmul.f32 %v507, %v512
    %v515 = vlaneseq
    %v516 = vshrl.u32 %v515, 7
    %v517 = vsub.s32 0, %v516
    %v518 = vrot.slane %v163, %v517
    %519 = vrot.lane.b32.xlu0 %v518, 64
    %v520 = vpop.permute.xlu0 %519
    %v522 = vadd.f32 %v486, %v520
    %v523 = vadd.f32 %v491, %v520
    %526 = vrot.lane.b32.xlu0 %v522, 64
    %v527 = vpop.permute.xlu0 %526
    %528 = vrot.lane.b32.xlu0 %v523, 64
    %v529 = vpop.permute.xlu0 %528
    %v532 = vmul.f32 %v511, %v527
    %v533 = vmul.f32 %v513, %v529
    %536 = vrot.lane.b32.xlu0 %v532, 64
    %v537 = vpop.permute.xlu0 %536
    %538 = vrot.lane.b32.xlu0 %v533, 64
    %v539 = vpop.permute.xlu0 %538
    %v542 = vadd.f32 %v411, %v537
    %v543 = vadd.f32 %v416, %v539
    %v544 = vtanh.pop %v542
    %v545 = vtanh.pop %v543
    %v546 = vsub.f32 1.0, %v511
    %v547 = vsub.f32 1.0, %v513
    %550 = vrot.lane.b32.xlu0 %v544, 96
    %v551 = vpop.permute.xlu0 %550
    %552 = vrot.lane.b32.xlu0 %v545, 96
    %v553 = vpop.permute.xlu0 %552
    %v556 = vmul.f32 %v546, %v551
    %v557 = vmul.f32 %v547, %v553
    %558 = vrot.lane.b32.xlu0 %v150, 32
    %v559 = vpop.permute.xlu0 %558
    %560 = vrot.lane.b32.xlu0 %v151, 32
    %v561 = vpop.permute.xlu0 %560
    %v564 = vmul.f32 %v511, %v559
    %v565 = vmul.f32 %v513, %v561
    %v566 = vadd.f32 %v556, %v564
    %v567 = vadd.f32 %v557, %v565
    %s568 = scalar_lea.vmem %s4, 32
    %v569 = vld [vmem:[%s568] sm:$0xff]
    %v570 = vld [vmem:[%s568 + $0x8] sm:$0xff]
    %v571 = vld [vmem:[%s568 + $0x10] sm:$0xff]
    %v572 = vld [vmem:[%s568 + $0x18] sm:$0xff]
    %575 = vrot.lane.b32.xlu0 %v566, 96
    %v576 = vpop.permute.xlu0 %575
    %577 = vrot.lane.b32.xlu0 %v567, 96
    %v578 = vpop.permute.xlu0 %577
    %v579 = vsel %vm168, %v576, 0
    %v581 = vsel %vm168, %v578, 0
    %583 = vmatprep.subr.mxu0 0.0
    %584 = vmatpush1.msra.mxu0 %v569
    %585 = vmatprep.subr.mxu0 0.0
    %586 = vmatpush1.msra.mxu0 %v570
    %587 = vmatprep.subr.mxu0 0.0
    %588 = vmatpush1.msra.mxu0 %v571
    %589 = vmatprep.subr.mxu0 0.0
    %590 = vmatpush1.msra.mxu0 %v572
    %591 = vmatprep.subr.mxu0 0.0
    %592 = vmatpush1.msra.mxu0 0.0
    %593 = vmatprep.subr.mxu0 0.0
    %594 = vmatpush1.msra.mxu0 0.0
    %595 = vmatprep.subr.mxu0 0.0
    %596 = vmatpush1.msra.mxu0 0.0
    %597 = vmatprep.subr.mxu0 0.0
    %598 = vmatpush1.msra.mxu0 0.0
    %599 = vmatprep.subr.mxu0 0.0
    %600 = vmatpush1.msra.mxu0 0.0
    %601 = vmatprep.subr.mxu0 0.0
    %602 = vmatpush1.msra.mxu0 0.0
    %603 = vmatprep.subr.mxu0 0.0
    %604 = vmatpush1.msra.mxu0 0.0
    %605 = vmatprep.subr.mxu0 0.0
    %606 = vmatpush1.msra.mxu0 0.0
    %607 = vmatprep.subr.mxu0 0.0
    %608 = vmatpush1.msra.mxu0 0.0
    %609 = vmatprep.subr.mxu0 0.0
    %610 = vmatpush1.msra.mxu0 0.0
    %611 = vmatprep.subr.mxu0 0.0
    %612 = vmatpush1.msra.mxu0 0.0
    %613 = vmatprep.subr.mxu0 0.0
    %614 = vmatpush1.msra.mxu0 0.0
    %615 = vmatprep.subr.mxu0 0.0
    %616 = vmatpush1.msra.mxu0 0.0
    %617 = vmatprep.subr.mxu0 0.0
    %618 = vmatpush1.msra.mxu0 0.0
    %619 = vmatprep.subr.mxu0 0.0
    %620 = vmatpush1.msra.mxu0 0.0
    %621 = vmatprep.subr.mxu0 0.0
    %622 = vmatpush1.msra.mxu0 0.0
    %623 = vmatprep.subr.mxu0 0.0
    %624 = vmatpush1.msra.mxu0 0.0
    %625 = vmatprep.subr.mxu0 0.0
    %626 = vmatpush1.msra.mxu0 0.0
    %627 = vmatprep.subr.mxu0 0.0
    %628 = vmatpush1.msra.mxu0 0.0
    %629 = vmatprep.subr.mxu0 0.0
    %630 = vmatpush1.msra.mxu0 0.0
    %631 = vmatprep.subr.mxu0 0.0
    %632 = vmatpush1.msra.mxu0 0.0
    %633 = vmatprep.subr.mxu0 0.0
    %634 = vmatpush1.msra.mxu0 0.0
    %635 = vmatprep.subr.mxu0 0.0
    %636 = vmatpush1.msra.mxu0 0.0
    %637 = vmatprep.subr.mxu0 0.0
    %638 = vmatpush1.msra.mxu0 0.0
    %639 = vmatprep.subr.mxu0 0.0
    %640 = vmatpush1.msra.mxu0 0.0
    %641 = vmatprep.subr.mxu0 0.0
    %642 = vmatpush1.msra.mxu0 0.0
    %643 = vmatprep.subr.mxu0 0.0
    %644 = vmatpush1.msra.mxu0 0.0
    %645 = vmatprep.subr.mxu0 0.0
    %646 = vmatpush1.msra.mxu0 0.0
    %647 = vmatprep.mubr.f32.mxu0 0.0
    %648 = vmatmul.mubr.f32.gmra.mrb[0].mxu0 %v579
    %v649 = vpop.f32.mrb[0].mxu0
    %v650 = vadd.f32 0.0, %v649
    %v651 = vpop.f32.mrb[0].mxu0
    %652 = vmatprep.mubr.f32.mxu0 0.0
    %653 = vmatmul.mubr.f32.gmra.mrb[0].mxu0 %v581
    %v654 = vpop.f32.mrb[0].mxu0
    %v655 = vadd.f32 0.0, %v654
    %v656 = vpop.f32.mrb[0].mxu0
    %657 = vdwg.mxu0
    %658 = vmatprep.subr.mxu0 0.0
    %659 = vmatpush1.msra.mxu0 %v650
    %660 = vmatprep.subr.mxu0 0.0
    %661 = vmatpush1.msra.mxu0 %v655
    %662 = vmatprep.subr.mxu0 0.0
    %663 = vmatpush1.msra.mxu0 0.0
    %664 = vmatprep.subr.mxu0 0.0
    %665 = vmatpush1.msra.mxu0 0.0
    %666 = vmatprep.subr.mxu0 0.0
    %667 = vmatpush1.msra.mxu0 0.0
    %668 = vmatprep.subr.mxu0 0.0
    %669 = vmatpush1.msra.mxu0 0.0
    %670 = vmatprep.subr.mxu0 0.0
    %671 = vmatpush1.msra.mxu0 0.0
    %672 = vmatprep.subr.mxu0 0.0
    %673 = vmatpush1.msra.mxu0 0.0
    %674 = vmatprep.subr.mxu0 0.0
    %675 = vmatpush1.msra.mxu0 0.0
    %676 = vmatprep.subr.mxu0 0.0
    %677 = vmatpush1.msra.mxu0 0.0
    %678 = vmatprep.subr.mxu0 0.0
    %679 = vmatpush1.msra.mxu0 0.0
    %680 = vmatprep.subr.mxu0 0.0
    %681 = vmatpush1.msra.mxu0 0.0
    %682 = vmatprep.subr.mxu0 0.0
    %683 = vmatpush1.msra.mxu0 0.0
    %684 = vmatprep.subr.mxu0 0.0
    %685 = vmatpush1.msra.mxu0 0.0
    %686 = vmatprep.subr.mxu0 0.0
    %687 = vmatpush1.msra.mxu0 0.0
    %688 = vmatprep.subr.mxu0 0.0
    %689 = vmatpush1.msra.mxu0 0.0
    %690 = vmatprep.subr.mxu0 0.0
    %691 = vmatpush1.msra.mxu0 0.0
    %692 = vmatprep.subr.mxu0 0.0
    %693 = vmatpush1.msra.mxu0 0.0
    %694 = vmatprep.subr.mxu0 0.0
    %695 = vmatpush1.msra.mxu0 0.0
    %696 = vmatprep.subr.mxu0 0.0
    %697 = vmatpush1.msra.mxu0 0.0
    %698 = vmatprep.subr.mxu0 0.0
    %699 = vmatpush1.msra.mxu0 0.0
    %700 = vmatprep.subr.mxu0 0.0
    %701 = vmatpush1.msra.mxu0 0.0
    %702 = vmatprep.subr.mxu0 0.0
    %703 = vmatpush1.msra.mxu0 0.0
    %704 = vmatprep.subr.mxu0 0.0
    %705 = vmatpush1.msra.mxu0 0.0
    %706 = vmatprep.subr.mxu0 0.0
    %707 = vmatpush1.msra.mxu0 0.0
    %708 = vmatprep.subr.mxu0 0.0
    %709 = vmatpush1.msra.mxu0 0.0
    %710 = vmatprep.subr.mxu0 0.0
    %711 = vmatpush1.msra.mxu0 0.0
    %712 = vmatprep.subr.mxu0 0.0
    %713 = vmatpush1.msra.mxu0 0.0
    %714 = vmatprep.subr.mxu0 0.0
    %715 = vmatpush1.msra.mxu0 0.0
    %716 = vmatprep.subr.mxu0 0.0
    %717 = vmatpush1.msra.mxu0 0.0
    %718 = vmatprep.subr.mxu0 0.0
    %719 = vmatpush1.msra.mxu0 0.0
    %720 = vmatprep.subr.mxu0 0.0
    %721 = vmatpush1.msra.mxu0 0.0
    %722 = vmatprep.mubr.f32.mxu0 0.0
    %723 = vmatmul.mubr.f32.gmra.mrb[0].mxu0 %v252
    %v724 = vpop.f32.mrb[0].mxu0
    %v725 = vadd.f32 0.0, %v724
    %v726 = vpop.f32.mrb[0].mxu0
    %727 = vmatprep.mubr.f32.mxu0 0.0
    %728 = vmatmul.mubr.f32.gmra.mrb[0].mxu0 %v255
    %v729 = vpop.f32.mrb[0].mxu0
    %v730 = vadd.f32 0.0, %v729
    %v731 = vpop.f32.mrb[0].mxu0
    %732 = vdwg.mxu0
    %v734 = vsel %vm168, %v725, 0
    %v737 = vsel %vm168, %v730, 0
    %739 = vmatprep.subr.mxu0 0.0
    %740 = vmatpush1.msra.mxu0 %v154
    %741 = vmatprep.subr.mxu0 0.0
    %742 = vmatpush1.msra.mxu0 %v155
    %743 = vmatprep.subr.mxu0 0.0
    %744 = vmatpush1.msra.mxu0 %v156
    %745 = vmatprep.subr.mxu0 0.0
    %746 = vmatpush1.msra.mxu0 %v157
    %747 = vmatprep.subr.mxu0 0.0
    %748 = vmatpush1.msra.mxu0 0.0
    %749 = vmatprep.subr.mxu0 0.0
    %750 = vmatpush1.msra.mxu0 0.0
    %751 = vmatprep.subr.mxu0 0.0
    %752 = vmatpush1.msra.mxu0 0.0
    %753 = vmatprep.subr.mxu0 0.0
    %754 = vmatpush1.msra.mxu0 0.0
    %755 = vmatprep.subr.mxu0 0.0
    %756 = vmatpush1.msra.mxu0 0.0
    %757 = vmatprep.subr.mxu0 0.0
    %758 = vmatpush1.msra.mxu0 0.0
    %759 = vmatprep.subr.mxu0 0.0
    %760 = vmatpush1.msra.mxu0 0.0
    %761 = vmatprep.subr.mxu0 0.0
    %762 = vmatpush1.msra.mxu0 0.0
    %763 = vmatprep.subr.mxu0 0.0
    %764 = vmatpush1.msra.mxu0 0.0
    %765 = vmatprep.subr.mxu0 0.0
    %766 = vmatpush1.msra.mxu0 0.0
    %767 = vmatprep.subr.mxu0 0.0
    %768 = vmatpush1.msra.mxu0 0.0
    %769 = vmatprep.subr.mxu0 0.0
    %770 = vmatpush1.msra.mxu0 0.0
    %771 = vmatprep.subr.mxu0 0.0
    %772 = vmatpush1.msra.mxu0 0.0
    %773 = vmatprep.subr.mxu0 0.0
    %774 = vmatpush1.msra.mxu0 0.0
    %775 = vmatprep.subr.mxu0 0.0
    %776 = vmatpush1.msra.mxu0 0.0
    %777 = vmatprep.subr.mxu0 0.0
    %778 = vmatpush1.msra.mxu0 0.0
    %779 = vmatprep.subr.mxu0 0.0
    %780 = vmatpush1.msra.mxu0 0.0
    %781 = vmatprep.subr.mxu0 0.0
    %782 = vmatpush1.msra.mxu0 0.0
    %783 = vmatprep.subr.mxu0 0.0
    %784 = vmatpush1.msra.mxu0 0.0
    %785 = vmatprep.subr.mxu0 0.0
    %786 = vmatpush1.msra.mxu0 0.0
    %787 = vmatprep.subr.mxu0 0.0
    %788 = vmatpush1.msra.mxu0 0.0
    %789 = vmatprep.subr.mxu0 0.0
    %790 = vmatpush1.msra.mxu0 0.0
    %791 = vmatprep.subr.mxu0 0.0
    %792 = vmatpush1.msra.mxu0 0.0
    %793 = vmatprep.subr.mxu0 0.0
    %794 = vmatpush1.msra.mxu0 0.0
    %795 = vmatprep.subr.mxu0 0.0
    %796 = vmatpush1.msra.mxu0 0.0
    %797 = vmatprep.subr.mxu0 0.0
    %798 = vmatpush1.msra.mxu0 0.0
    %799 = vmatprep.subr.mxu0 0.0
    %800 = vmatpush1.msra.mxu0 0.0
    %801 = vmatprep.subr.mxu0 0.0
    %802 = vmatpush1.msra.mxu0 0.0
    %803 = vmatprep.mubr.f32.mxu0 0.0
    %804 = vmatmul.mubr.f32.gmra.mrb[0].mxu0 %v734
    %v805 = vpop.f32.mrb[0].mxu0
    %v806 = vadd.f32 %v336, %v805
    %v807 = vpop.f32.mrb[0].mxu0
    %808 = vmatprep.mubr.f32.mxu0 0.0
    %809 = vmatmul.mubr.f32.gmra.mrb[0].mxu0 %v737
    %v810 = vpop.f32.mrb[0].mxu0
    %v811 = vadd.f32 %v336, %v810
    %v812 = vpop.f32.mrb[0].mxu0
    %813 = vdwg.mxu0
    %814 = vmatprep.subr.mxu0 0.0
    %815 = vmatpush1.msra.mxu0 %v158
    %816 = vmatprep.subr.mxu0 0.0
    %817 = vmatpush1.msra.mxu0 %v159
    %818 = vmatprep.subr.mxu0 0.0
    %819 = vmatpush1.msra.mxu0 %v160
    %820 = vmatprep.subr.mxu0 0.0
    %821 = vmatpush1.msra.mxu0 %v161
    %822 = vmatprep.subr.mxu0 0.0
    %823 = vmatpush1.msra.mxu0 0.0
    %824 = vmatprep.subr.mxu0 0.0
    %825 = vmatpush1.msra.mxu0 0.0
    %826 = vmatprep.subr.mxu0 0.0
    %827 = vmatpush1.msra.mxu0 0.0
    %828 = vmatprep.subr.mxu0 0.0
    %829 = vmatpush1.msra.mxu0 0.0
    %830 = vmatprep.subr.mxu0 0.0
    %831 = vmatpush1.msra.mxu0 0.0
    %832 = vmatprep.subr.mxu0 0.0
    %833 = vmatpush1.msra.mxu0 0.0
    %834 = vmatprep.subr.mxu0 0.0
    %835 = vmatpush1.msra.mxu0 0.0
    %836 = vmatprep.subr.mxu0 0.0
    %837 = vmatpush1.msra.mxu0 0.0
    %838 = vmatprep.subr.mxu0 0.0
    %839 = vmatpush1.msra.mxu0 0.0
    %840 = vmatprep.subr.mxu0 0.0
    %841 = vmatpush1.msra.mxu0 0.0
    %842 = vmatprep.subr.mxu0 0.0
    %843 = vmatpush1.msra.mxu0 0.0
    %844 = vmatprep.subr.mxu0 0.0
    %845 = vmatpush1.msra.mxu0 0.0
    %846 = vmatprep.subr.mxu0 0.0
    %847 = vmatpush1.msra.mxu0 0.0
    %848 = vmatprep.subr.mxu0 0.0
    %849 = vmatpush1.msra.mxu0 0.0
    %850 = vmatprep.subr.mxu0 0.0
    %851 = vmatpush1.msra.mxu0 0.0
    %852 = vmatprep.subr.mxu0 0.0
    %853 = vmatpush1.msra.mxu0 0.0
    %854 = vmatprep.subr.mxu0 0.0
    %855 = vmatpush1.msra.mxu0 0.0
    %856 = vmatprep.subr.mxu0 0.0
    %857 = vmatpush1.msra.mxu0 0.0
    %858 = vmatprep.subr.mxu0 0.0
    %859 = vmatpush1.msra.mxu0 0.0
    %860 = vmatprep.subr.mxu0 0.0
    %861 = vmatpush1.msra.mxu0 0.0
    %862 = vmatprep.subr.mxu0 0.0
    %863 = vmatpush1.msra.mxu0 0.0
    %864 = vmatprep.subr.mxu0 0.0
    %865 = vmatpush1.msra.mxu0 0.0
    %866 = vmatprep.subr.mxu0 0.0
    %867 = vmatpush1.msra.mxu0 0.0
    %868 = vmatprep.subr.mxu0 0.0
    %869 = vmatpush1.msra.mxu0 0.0
    %870 = vmatprep.subr.mxu0 0.0
    %871 = vmatpush1.msra.mxu0 0.0
    %872 = vmatprep.subr.mxu0 0.0
    %873 = vmatpush1.msra.mxu0 0.0
    %874 = vmatprep.subr.mxu0 0.0
    %875 = vmatpush1.msra.mxu0 0.0
    %876 = vmatprep.subr.mxu0 0.0
    %877 = vmatpush1.msra.mxu0 0.0
    %878 = vmatprep.mubr.f32.mxu0 0.0
    %879 = vmatmul.mubr.f32.gmra.mrb[0].mxu0 %v579
    %v880 = vpop.f32.mrb[0].mxu0
    %v881 = vadd.f32 0.0, %v880
    %v882 = vpop.f32.mrb[0].mxu0
    %883 = vmatprep.mubr.f32.mxu0 0.0
    %884 = vmatmul.mubr.f32.gmra.mrb[0].mxu0 %v581
    %v885 = vpop.f32.mrb[0].mxu0
    %v886 = vadd.f32 0.0, %v885
    %v887 = vpop.f32.mrb[0].mxu0
    %888 = vdwg.mxu0
    %v889 = vadd.f32 %v806, %v881
    %v890 = vadd.f32 %v811, %v886
    %v891 = vand.u32 2147483647, %v889
    %v892 = vand.u32 2147483647, %v890
    %v893 = vsub.f32 0.0, %v891
    %v894 = vsub.f32 0.0, %v892
    %v895 = vmul.f32 %v893, 1.442695
    %v896 = vpow.pop %v895
    %v897 = vmul.f32 %v894, 1.442695
    %v898 = vpow.pop %v897
    %vm899 = vcmp.ge.f32.partialorder %v889, 0.0
    %vm900 = vcmp.ge.f32.partialorder %v890, 0.0
    %v901 = vsel %vm899, 1.0, %v896
    %v902 = vsel %vm900, 1.0, %v898
    %v903 = vadd.f32 %v896, 1.0
    %v904 = vadd.f32 %v898, 1.0
    %v905 = vrcp.pop %v903
    %v906 = vmul.f32 %v901, %v905
    %v907 = vrcp.pop %v904
    %v908 = vmul.f32 %v902, %v907
    %v909 = vadd.f32 %v881, %v520
    %v910 = vadd.f32 %v886, %v520
    %913 = vrot.lane.b32.xlu0 %v909, 64
    %v914 = vpop.permute.xlu0 %913
    %915 = vrot.lane.b32.xlu0 %v910, 64
    %v916 = vpop.permute.xlu0 %915
    %v919 = vmul.f32 %v906, %v914
    %v920 = vmul.f32 %v908, %v916
    %923 = vrot.lane.b32.xlu0 %v919, 64
    %v924 = vpop.permute.xlu0 %923
    %925 = vrot.lane.b32.xlu0 %v920, 64
    %v926 = vpop.permute.xlu0 %925
    %v929 = vadd.f32 %v806, %v924
    %v930 = vadd.f32 %v811, %v926
    %v931 = vtanh.pop %v929
    %v932 = vtanh.pop %v930
    %v933 = vsub.f32 1.0, %v906
    %v934 = vsub.f32 1.0, %v908
    %937 = vrot.lane.b32.xlu0 %v931, 96
    %v938 = vpop.permute.xlu0 %937
    %939 = vrot.lane.b32.xlu0 %v932, 96
    %v940 = vpop.permute.xlu0 %939
    %v943 = vmul.f32 %v933, %v938
    %v944 = vmul.f32 %v934, %v940
    %v945 = vmul.f32 %v906, %v566
    %v946 = vmul.f32 %v908, %v567
    %v947 = vadd.f32 %v943, %v945
    %v948 = vadd.f32 %v944, %v946
    %s949 = scalar_lea.vmem %s4, 64
    %v950 = vld [vmem:[%s949] sm:$0xff]
    %v951 = vld [vmem:[%s949 + $0x8] sm:$0xff]
    %v952 = vld [vmem:[%s949 + $0x10] sm:$0xff]
    %v953 = vld [vmem:[%s949 + $0x18] sm:$0xff]
    %956 = vrot.lane.b32.xlu0 %v947, 96
    %v957 = vpop.permute.xlu0 %956
    %958 = vrot.lane.b32.xlu0 %v948, 96
    %v959 = vpop.permute.xlu0 %958
    %v960 = vsel %vm168, %v957, 0
    %v962 = vsel %vm168, %v959, 0
    %964 = vmatprep.subr.mxu0 0.0
    %965 = vmatpush1.msra.mxu0 %v950
    %966 = vmatprep.subr.mxu0 0.0
    %967 = vmatpush1.msra.mxu0 %v951
    %968 = vmatprep.subr.mxu0 0.0
    %969 = vmatpush1.msra.mxu0 %v952
    %970 = vmatprep.subr.mxu0 0.0
    %971 = vmatpush1.msra.mxu0 %v953
    %972 = vmatprep.subr.mxu0 0.0
    %973 = vmatpush1.msra.mxu0 0.0
    %974 = vmatprep.subr.mxu0 0.0
    %975 = vmatpush1.msra.mxu0 0.0
    %976 = vmatprep.subr.mxu0 0.0
    %977 = vmatpush1.msra.mxu0 0.0
    %978 = vmatprep.subr.mxu0 0.0
    %979 = vmatpush1.msra.mxu0 0.0
    %980 = vmatprep.subr.mxu0 0.0
    %981 = vmatpush1.msra.mxu0 0.0
    %982 = vmatprep.subr.mxu0 0.0
    %983 = vmatpush1.msra.mxu0 0.0
    %984 = vmatprep.subr.mxu0 0.0
    %985 = vmatpush1.msra.mxu0 0.0
    %986 = vmatprep.subr.mxu0 0.0
    %987 = vmatpush1.msra.mxu0 0.0
    %988 = vmatprep.subr.mxu0 0.0
    %989 = vmatpush1.msra.mxu0 0.0
    %990 = vmatprep.subr.mxu0 0.0
    %991 = vmatpush1.msra.mxu0 0.0
    %992 = vmatprep.subr.mxu0 0.0
    %993 = vmatpush1.msra.mxu0 0.0
    %994 = vmatprep.subr.mxu0 0.0
    %995 = vmatpush1.msra.mxu0 0.0
    %996 = vmatprep.subr.mxu0 0.0
    %997 = vmatpush1.msra.mxu0 0.0
    %998 = vmatprep.subr.mxu0 0.0
    %999 = vmatpush1.msra.mxu0 0.0
    %1000 = vmatprep.subr.mxu0 0.0
    %1001 = vmatpush1.msra.mxu0 0.0
    %1002 = vmatprep.subr.mxu0 0.0
    %1003 = vmatpush1.msra.mxu0 0.0
    %1004 = vmatprep.subr.mxu0 0.0
    %1005 = vmatpush1.msra.mxu0 0.0
    %1006 = vmatprep.subr.mxu0 0.0
    %1007 = vmatpush1.msra.mxu0 0.0
    %1008 = vmatprep.subr.mxu0 0.0
    %1009 = vmatpush1.msra.mxu0 0.0
    %1010 = vmatprep.subr.mxu0 0.0
    %1011 = vmatpush1.msra.mxu0 0.0
    %1012 = vmatprep.subr.mxu0 0.0
    %1013 = vmatpush1.msra.mxu0 0.0
    %1014 = vmatprep.subr.mxu0 0.0
    %1015 = vmatpush1.msra.mxu0 0.0
    %1016 = vmatprep.subr.mxu0 0.0
    %1017 = vmatpush1.msra.mxu0 0.0
    %1018 = vmatprep.subr.mxu0 0.0
    %1019 = vmatpush1.msra.mxu0 0.0
    %1020 = vmatprep.subr.mxu0 0.0
    %1021 = vmatpush1.msra.mxu0 0.0
    %1022 = vmatprep.subr.mxu0 0.0
    %1023 = vmatpush1.msra.mxu0 0.0
    %1024 = vmatprep.subr.mxu0 0.0
    %1025 = vmatpush1.msra.mxu0 0.0
    %1026 = vmatprep.subr.mxu0 0.0
    %1027 = vmatpush1.msra.mxu0 0.0
    %1028 = vmatprep.mubr.f32.mxu0 0.0
    %1029 = vmatmul.mubr.f32.gmra.mrb[0].mxu0 %v960
    %v1030 = vpop.f32.mrb[0].mxu0
    %v1031 = vadd.f32 0.0, %v1030
    %v1032 = vpop.f32.mrb[0].mxu0
    %1033 = vmatprep.mubr.f32.mxu0 0.0
    %1034 = vmatmul.mubr.f32.gmra.mrb[0].mxu0 %v962
    %v1035 = vpop.f32.mrb[0].mxu0
    %v1036 = vadd.f32 0.0, %v1035
    %v1037 = vpop.f32.mrb[0].mxu0
    %1038 = vdwg.mxu0
    %1039 = vmatprep.subr.mxu0 0.0
    %1040 = vmatpush1.msra.mxu0 %v1031
    %1041 = vmatprep.subr.mxu0 0.0
    %1042 = vmatpush1.msra.mxu0 %v1036
    %1043 = vmatprep.subr.mxu0 0.0
    %1044 = vmatpush1.msra.mxu0 0.0
    %1045 = vmatprep.subr.mxu0 0.0
    %1046 = vmatpush1.msra.mxu0 0.0
    %1047 = vmatprep.subr.mxu0 0.0
    %1048 = vmatpush1.msra.mxu0 0.0
    %1049 = vmatprep.subr.mxu0 0.0
    %1050 = vmatpush1.msra.mxu0 0.0
    %1051 = vmatprep.subr.mxu0 0.0
    %1052 = vmatpush1.msra.mxu0 0.0
    %1053 = vmatprep.subr.mxu0 0.0
    %1054 = vmatpush1.msra.mxu0 0.0
    %1055 = vmatprep.subr.mxu0 0.0
    %1056 = vmatpush1.msra.mxu0 0.0
    %1057 = vmatprep.subr.mxu0 0.0
    %1058 = vmatpush1.msra.mxu0 0.0
    %1059 = vmatprep.subr.mxu0 0.0
    %1060 = vmatpush1.msra.mxu0 0.0
    %1061 = vmatprep.subr.mxu0 0.0
    %1062 = vmatpush1.msra.mxu0 0.0
    %1063 = vmatprep.subr.mxu0 0.0
    %1064 = vmatpush1.msra.mxu0 0.0
    %1065 = vmatprep.subr.mxu0 0.0
    %1066 = vmatpush1.msra.mxu0 0.0
    %1067 = vmatprep.subr.mxu0 0.0
    %1068 = vmatpush1.msra.mxu0 0.0
    %1069 = vmatprep.subr.mxu0 0.0
    %1070 = vmatpush1.msra.mxu0 0.0
    %1071 = vmatprep.subr.mxu0 0.0
    %1072 = vmatpush1.msra.mxu0 0.0
    %1073 = vmatprep.subr.mxu0 0.0
    %1074 = vmatpush1.msra.mxu0 0.0
    %1075 = vmatprep.subr.mxu0 0.0
    %1076 = vmatpush1.msra.mxu0 0.0
    %1077 = vmatprep.subr.mxu0 0.0
    %1078 = vmatpush1.msra.mxu0 0.0
    %1079 = vmatprep.subr.mxu0 0.0
    %1080 = vmatpush1.msra.mxu0 0.0
    %1081 = vmatprep.subr.mxu0 0.0
    %1082 = vmatpush1.msra.mxu0 0.0
    %1083 = vmatprep.subr.mxu0 0.0
    %1084 = vmatpush1.msra.mxu0 0.0
    %1085 = vmatprep.subr.mxu0 0.0
    %1086 = vmatpush1.msra.mxu0 0.0
    %1087 = vmatprep.subr.mxu0 0.0
    %1088 = vmatpush1.msra.mxu0 0.0
    %1089 = vmatprep.subr.mxu0 0.0
    %1090 = vmatpush1.msra.mxu0 0.0
    %1091 = vmatprep.subr.mxu0 0.0
    %1092 = vmatpush1.msra.mxu0 0.0
    %1093 = vmatprep.subr.mxu0 0.0
    %1094 = vmatpush1.msra.mxu0 0.0
    %1095 = vmatprep.subr.mxu0 0.0
    %1096 = vmatpush1.msra.mxu0 0.0
    %1097 = vmatprep.subr.mxu0 0.0
    %1098 = vmatpush1.msra.mxu0 0.0
    %1099 = vmatprep.subr.mxu0 0.0
    %1100 = vmatpush1.msra.mxu0 0.0
    %1101 = vmatprep.subr.mxu0 0.0
    %1102 = vmatpush1.msra.mxu0 0.0
    %1103 = vmatprep.mubr.f32.mxu0 0.0
    %1104 = vmatmul.mubr.f32.gmra.mrb[0].mxu0 %v252
    %v1105 = vpop.f32.mrb[0].mxu0
    %v1106 = vadd.f32 0.0, %v1105
    %v1107 = vpop.f32.mrb[0].mxu0
    %1108 = vmatprep.mubr.f32.mxu0 0.0
    %1109 = vmatmul.mubr.f32.gmra.mrb[0].mxu0 %v255
    %v1110 = vpop.f32.mrb[0].mxu0
    %v1111 = vadd.f32 0.0, %v1110
    %v1112 = vpop.f32.mrb[0].mxu0
    %1113 = vdwg.mxu0
    %v1115 = vsel %vm168, %v1106, 0
    %v1118 = vsel %vm168, %v1111, 0
    %1120 = vmatprep.subr.mxu0 0.0
    %1121 = vmatpush1.msra.mxu0 %v154
    %1122 = vmatprep.subr.mxu0 0.0
    %1123 = vmatpush1.msra.mxu0 %v155
    %1124 = vmatprep.subr.mxu0 0.0
    %1125 = vmatpush1.msra.mxu0 %v156
    %1126 = vmatprep.subr.mxu0 0.0
    %1127 = vmatpush1.msra.mxu0 %v157
    %1128 = vmatprep.subr.mxu0 0.0
    %1129 = vmatpush1.msra.mxu0 0.0
    %1130 = vmatprep.subr.mxu0 0.0
    %1131 = vmatpush1.msra.mxu0 0.0
    %1132 = vmatprep.subr.mxu0 0.0
    %1133 = vmatpush1.msra.mxu0 0.0
    %1134 = vmatprep.subr.mxu0 0.0
    %1135 = vmatpush1.msra.mxu0 0.0
    %1136 = vmatprep.subr.mxu0 0.0
    %1137 = vmatpush1.msra.mxu0 0.0
    %1138 = vmatprep.subr.mxu0 0.0
    %1139 = vmatpush1.msra.mxu0 0.0
    %1140 = vmatprep.subr.mxu0 0.0
    %1141 = vmatpush1.msra.mxu0 0.0
    %1142 = vmatprep.subr.mxu0 0.0
    %1143 = vmatpush1.msra.mxu0 0.0
    %1144 = vmatprep.subr.mxu0 0.0
    %1145 = vmatpush1.msra.mxu0 0.0
    %1146 = vmatprep.subr.mxu0 0.0
    %1147 = vmatpush1.msra.mxu0 0.0
    %1148 = vmatprep.subr.mxu0 0.0
    %1149 = vmatpush1.msra.mxu0 0.0
    %1150 = vmatprep.subr.mxu0 0.0
    %1151 = vmatpush1.msra.mxu0 0.0
    %1152 = vmatprep.subr.mxu0 0.0
    %1153 = vmatpush1.msra.mxu0 0.0
    %1154 = vmatprep.subr.mxu0 0.0
    %1155 = vmatpush1.msra.mxu0 0.0
    %1156 = vmatprep.subr.mxu0 0.0
    %1157 = vmatpush1.msra.mxu0 0.0
    %1158 = vmatprep.subr.mxu0 0.0
    %1159 = vmatpush1.msra.mxu0 0.0
    %1160 = vmatprep.subr.mxu0 0.0
    %1161 = vmatpush1.msra.mxu0 0.0
    %1162 = vmatprep.subr.mxu0 0.0
    %1163 = vmatpush1.msra.mxu0 0.0
    %1164 = vmatprep.subr.mxu0 0.0
    %1165 = vmatpush1.msra.mxu0 0.0
    %1166 = vmatprep.subr.mxu0 0.0
    %1167 = vmatpush1.msra.mxu0 0.0
    %1168 = vmatprep.subr.mxu0 0.0
    %1169 = vmatpush1.msra.mxu0 0.0
    %1170 = vmatprep.subr.mxu0 0.0
    %1171 = vmatpush1.msra.mxu0 0.0
    %1172 = vmatprep.subr.mxu0 0.0
    %1173 = vmatpush1.msra.mxu0 0.0
    %1174 = vmatprep.subr.mxu0 0.0
    %1175 = vmatpush1.msra.mxu0 0.0
    %1176 = vmatprep.subr.mxu0 0.0
    %1177 = vmatpush1.msra.mxu0 0.0
    %1178 = vmatprep.subr.mxu0 0.0
    %1179 = vmatpush1.msra.mxu0 0.0
    %1180 = vmatprep.subr.mxu0 0.0
    %1181 = vmatpush1.msra.mxu0 0.0
    %1182 = vmatprep.subr.mxu0 0.0
    %1183 = vmatpush1.msra.mxu0 0.0
    %1184 = vmatprep.mubr.f32.mxu0 0.0
    %1185 = vmatmul.mubr.f32.gmra.mrb[0].mxu0 %v1115
    %v1186 = vpop.f32.mrb[0].mxu0
    %v1187 = vadd.f32 %v336, %v1186
    %v1188 = vpop.f32.mrb[0].mxu0
    %1189 = vmatprep.mubr.f32.mxu0 0.0
    %1190 = vmatmul.mubr.f32.gmra.mrb[0].mxu0 %v1118
    %v1191 = vpop.f32.mrb[0].mxu0
    %v1192 = vadd.f32 %v336, %v1191
    %v1193 = vpop.f32.mrb[0].mxu0
    %1194 = vdwg.mxu0
    %1195 = vmatprep.subr.mxu0 0.0
    %1196 = vmatpush1.msra.mxu0 %v158
    %1197 = vmatprep.subr.mxu0 0.0
    %1198 = vmatpush1.msra.mxu0 %v159
    %1199 = vmatprep.subr.mxu0 0.0
    %1200 = vmatpush1.msra.mxu0 %v160
    %1201 = vmatprep.subr.mxu0 0.0
    %1202 = vmatpush1.msra.mxu0 %v161
    %1203 = vmatprep.subr.mxu0 0.0
    %1204 = vmatpush1.msra.mxu0 0.0
    %1205 = vmatprep.subr.mxu0 0.0
    %1206 = vmatpush1.msra.mxu0 0.0
    %1207 = vmatprep.subr.mxu0 0.0
    %1208 = vmatpush1.msra.mxu0 0.0
    %1209 = vmatprep.subr.mxu0 0.0
    %1210 = vmatpush1.msra.mxu0 0.0
    %1211 = vmatprep.subr.mxu0 0.0
    %1212 = vmatpush1.msra.mxu0 0.0
    %1213 = vmatprep.subr.mxu0 0.0
    %1214 = vmatpush1.msra.mxu0 0.0
    %1215 = vmatprep.subr.mxu0 0.0
    %1216 = vmatpush1.msra.mxu0 0.0
    %1217 = vmatprep.subr.mxu0 0.0
    %1218 = vmatpush1.msra.mxu0 0.0
    %1219 = vmatprep.subr.mxu0 0.0
    %1220 = vmatpush1.msra.mxu0 0.0
    %1221 = vmatprep.subr.mxu0 0.0
    %1222 = vmatpush1.msra.mxu0 0.0
    %1223 = vmatprep.subr.mxu0 0.0
    %1224 = vmatpush1.msra.mxu0 0.0
    %1225 = vmatprep.subr.mxu0 0.0
    %1226 = vmatpush1.msra.mxu0 0.0
    %1227 = vmatprep.subr.mxu0 0.0
    %1228 = vmatpush1.msra.mxu0 0.0
    %1229 = vmatprep.subr.mxu0 0.0
    %1230 = vmatpush1.msra.mxu0 0.0
    %1231 = vmatprep.subr.mxu0 0.0
    %1232 = vmatpush1.msra.mxu0 0.0
    %1233 = vmatprep.subr.mxu0 0.0
    %1234 = vmatpush1.msra.mxu0 0.0
    %1235 = vmatprep.subr.mxu0 0.0
    %1236 = vmatpush1.msra.mxu0 0.0
    %1237 = vmatprep.subr.mxu0 0.0
    %1238 = vmatpush1.msra.mxu0 0.0
    %1239 = vmatprep.subr.mxu0 0.0
    %1240 = vmatpush1.msra.mxu0 0.0
    %1241 = vmatprep.subr.mxu0 0.0
    %1242 = vmatpush1.msra.mxu0 0.0
    %1243 = vmatprep.subr.mxu0 0.0
    %1244 = vmatpush1.msra.mxu0 0.0
    %1245 = vmatprep.subr.mxu0 0.0
    %1246 = vmatpush1.msra.mxu0 0.0
    %1247 = vmatprep.subr.mxu0 0.0
    %1248 = vmatpush1.msra.mxu0 0.0
    %1249 = vmatprep.subr.mxu0 0.0
    %1250 = vmatpush1.msra.mxu0 0.0
    %1251 = vmatprep.subr.mxu0 0.0
    %1252 = vmatpush1.msra.mxu0 0.0
    %1253 = vmatprep.subr.mxu0 0.0
    %1254 = vmatpush1.msra.mxu0 0.0
    %1255 = vmatprep.subr.mxu0 0.0
    %1256 = vmatpush1.msra.mxu0 0.0
    %1257 = vmatprep.subr.mxu0 0.0
    %1258 = vmatpush1.msra.mxu0 0.0
    %1259 = vmatprep.mubr.f32.mxu0 0.0
    %1260 = vmatmul.mubr.f32.gmra.mrb[0].mxu0 %v960
    %v1261 = vpop.f32.mrb[0].mxu0
    %v1262 = vadd.f32 0.0, %v1261
    %v1263 = vpop.f32.mrb[0].mxu0
    %1264 = vmatprep.mubr.f32.mxu0 0.0
    %1265 = vmatmul.mubr.f32.gmra.mrb[0].mxu0 %v962
    %v1266 = vpop.f32.mrb[0].mxu0
    %v1267 = vadd.f32 0.0, %v1266
    %v1268 = vpop.f32.mrb[0].mxu0
    %1269 = vdwg.mxu0
    %v1270 = vadd.f32 %v1187, %v1262
    %v1271 = vadd.f32 %v1192, %v1267
    %v1272 = vand.u32 2147483647, %v1270
    %v1273 = vand.u32 2147483647, %v1271
    %v1274 = vsub.f32 0.0, %v1272
    %v1275 = vsub.f32 0.0, %v1273
    %v1276 = vmul.f32 %v1274, 1.442695
    %v1277 = vpow.pop %v1276
    %v1278 = vmul.f32 %v1275, 1.442695
    %v1279 = vpow.pop %v1278
    %vm1280 = vcmp.ge.f32.partialorder %v1270, 0.0
    %vm1281 = vcmp.ge.f32.partialorder %v1271, 0.0
    %v1282 = vsel %vm1280, 1.0, %v1277
    %v1283 = vsel %vm1281, 1.0, %v1279
    %v1284 = vadd.f32 %v1277, 1.0
    %v1285 = vadd.f32 %v1279, 1.0
    %v1286 = vrcp.pop %v1284
    %v1287 = vmul.f32 %v1282, %v1286
    %v1288 = vrcp.pop %v1285
    %v1289 = vmul.f32 %v1283, %v1288
    %v1290 = vadd.f32 %v1262, %v520
    %v1291 = vadd.f32 %v1267, %v520
    %1294 = vrot.lane.b32.xlu0 %v1290, 64
    %v1295 = vpop.permute.xlu0 %1294
    %1296 = vrot.lane.b32.xlu0 %v1291, 64
    %v1297 = vpop.permute.xlu0 %1296
    %v1300 = vmul.f32 %v1287, %v1295
    %v1301 = vmul.f32 %v1289, %v1297
    %1304 = vrot.lane.b32.xlu0 %v1300, 64
    %v1305 = vpop.permute.xlu0 %1304
    %1306 = vrot.lane.b32.xlu0 %v1301, 64
    %v1307 = vpop.permute.xlu0 %1306
    %v1310 = vadd.f32 %v1187, %v1305
    %v1311 = vadd.f32 %v1192, %v1307
    %v1312 = vtanh.pop %v1310
    %v1313 = vtanh.pop %v1311
    %v1314 = vsub.f32 1.0, %v1287
    %v1315 = vsub.f32 1.0, %v1289
    %1318 = vrot.lane.b32.xlu0 %v1312, 96
    %v1319 = vpop.permute.xlu0 %1318
    %1320 = vrot.lane.b32.xlu0 %v1313, 96
    %v1321 = vpop.permute.xlu0 %1320
    %v1324 = vmul.f32 %v1314, %v1319
    %v1325 = vmul.f32 %v1315, %v1321
    %v1326 = vmul.f32 %v1287, %v947
    %v1327 = vmul.f32 %v1289, %v948
    %v1328 = vadd.f32 %v1324, %v1326
    %v1329 = vadd.f32 %v1325, %v1327
    %v1330 = vmax.f32 %v1328, 0.0
    %v1331 = vmax.f32 %v1329, 0.0
    %v1332 = vld [vmem:[%s3] sm:$0x3]
    %1335 = vrot.lane.b32.xlu0 %v1330, 96
    %v1336 = vpop.permute.xlu0 %1335
    %1337 = vrot.lane.b32.xlu0 %v1331, 96
    %v1338 = vpop.permute.xlu0 %1337
    %v1342 = vsel %vm250, %v1332, 0
    %1344 = vmatprep.subr.mxu0 0.0
    %1345 = vmatpush1.msra.mxu0 %v1336
    %1346 = vmatprep.subr.mxu0 0.0
    %1347 = vmatpush1.msra.mxu0 %v1338
    %1348 = vmatprep.subr.mxu0 0.0
    %1349 = vmatpush1.msra.mxu0 0.0
    %1350 = vmatprep.subr.mxu0 0.0
    %1351 = vmatpush1.msra.mxu0 0.0
    %1352 = vmatprep.subr.mxu0 0.0
    %1353 = vmatpush1.msra.mxu0 0.0
    %1354 = vmatprep.subr.mxu0 0.0
    %1355 = vmatpush1.msra.mxu0 0.0
    %1356 = vmatprep.subr.mxu0 0.0
    %1357 = vmatpush1.msra.mxu0 0.0
    %1358 = vmatprep.subr.mxu0 0.0
    %1359 = vmatpush1.msra.mxu0 0.0
    %1360 = vmatprep.subr.mxu0 0.0
    %1361 = vmatpush1.msra.mxu0 0.0
    %1362 = vmatprep.subr.mxu0 0.0
    %1363 = vmatpush1.msra.mxu0 0.0
    %1364 = vmatprep.subr.mxu0 0.0
    %1365 = vmatpush1.msra.mxu0 0.0
    %1366 = vmatprep.subr.mxu0 0.0
    %1367 = vmatpush1.msra.mxu0 0.0
    %1368 = vmatprep.subr.mxu0 0.0
    %1369 = vmatpush1.msra.mxu0 0.0
    %1370 = vmatprep.subr.mxu0 0.0
    %1371 = vmatpush1.msra.mxu0 0.0
    %1372 = vmatprep.subr.mxu0 0.0
    %1373 = vmatpush1.msra.mxu0 0.0
    %1374 = vmatprep.subr.mxu0 0.0
    %1375 = vmatpush1.msra.mxu0 0.0
    %1376 = vmatprep.subr.mxu0 0.0
    %1377 = vmatpush1.msra.mxu0 0.0
    %1378 = vmatprep.subr.mxu0 0.0
    %1379 = vmatpush1.msra.mxu0 0.0
    %1380 = vmatprep.subr.mxu0 0.0
    %1381 = vmatpush1.msra.mxu0 0.0
    %1382 = vmatprep.subr.mxu0 0.0
    %1383 = vmatpush1.msra.mxu0 0.0
    %1384 = vmatprep.subr.mxu0 0.0
    %1385 = vmatpush1.msra.mxu0 0.0
    %1386 = vmatprep.subr.mxu0 0.0
    %1387 = vmatpush1.msra.mxu0 0.0
    %1388 = vmatprep.subr.mxu0 0.0
    %1389 = vmatpush1.msra.mxu0 0.0
    %1390 = vmatprep.subr.mxu0 0.0
    %1391 = vmatpush1.msra.mxu0 0.0
    %1392 = vmatprep.subr.mxu0 0.0
    %1393 = vmatpush1.msra.mxu0 0.0
    %1394 = vmatprep.subr.mxu0 0.0
    %1395 = vmatpush1.msra.mxu0 0.0
    %1396 = vmatprep.subr.mxu0 0.0
    %1397 = vmatpush1.msra.mxu0 0.0
    %1398 = vmatprep.subr.mxu0 0.0
    %1399 = vmatpush1.msra.mxu0 0.0
    %1400 = vmatprep.subr.mxu0 0.0
    %1401 = vmatpush1.msra.mxu0 0.0
    %1402 = vmatprep.subr.mxu0 0.0
    %1403 = vmatpush1.msra.mxu0 0.0
    %1404 = vmatprep.subr.mxu0 0.0
    %1405 = vmatpush1.msra.mxu0 0.0
    %1406 = vmatprep.subr.mxu0 0.0
    %1407 = vmatpush1.msra.mxu0 0.0
    %1408 = vmatprep.mubr.f32.mxu0 0.0
    %1409 = vmatmul.mubr.f32.gmra.mrb[0].mxu0 %v1342
    %v1410 = vpop.f32.mrb[0].mxu0
    %v1411 = vadd.f32 0.0, %v1410
    %v1412 = vpop.f32.mrb[0].mxu0
    %1413 = vdwg.mxu0
    %v1414 = vld [vmem:[%s9] sm:$0xff]
    %v1415 = vld [vmem:[%s9 + $0x8] sm:$0xff]
    %v1416 = vld [vmem:[%s9 + $0x10] sm:$0xff]
    %v1417 = vld [vmem:[%s9 + $0x18] sm:$0xff]
    %v1418 = vld [vmem:[%s10] sm:$0x1]
    %v1420 = vlaneseq
    %v1421 = vshrl.u32 %v1420, 7
    %v1422 = vsub.s32 0, %v1421
    %v1423 = vrot.slane %v1418, %v1422
    %v1426 = vsel %vm168, %v1411, 0
    %1428 = vmatprep.subr.mxu0 0.0
    %1429 = vmatpush1.msra.mxu0 %v1414
    %1430 = vmatprep.subr.mxu0 0.0
    %1431 = vmatpush1.msra.mxu0 %v1415
    %1432 = vmatprep.subr.mxu0 0.0
    %1433 = vmatpush1.msra.mxu0 %v1416
    %1434 = vmatprep.subr.mxu0 0.0
    %1435 = vmatpush1.msra.mxu0 %v1417
    %1436 = vmatprep.subr.mxu0 0.0
    %1437 = vmatpush1.msra.mxu0 0.0
    %1438 = vmatprep.subr.mxu0 0.0
    %1439 = vmatpush1.msra.mxu0 0.0
    %1440 = vmatprep.subr.mxu0 0.0
    %1441 = vmatpush1.msra.mxu0 0.0
    %1442 = vmatprep.subr.mxu0 0.0
    %1443 = vmatpush1.msra.mxu0 0.0
    %1444 = vmatprep.subr.mxu0 0.0
    %1445 = vmatpush1.msra.mxu0 0.0
    %1446 = vmatprep.subr.mxu0 0.0
    %1447 = vmatpush1.msra.mxu0 0.0
    %1448 = vmatprep.subr.mxu0 0.0
    %1449 = vmatpush1.msra.mxu0 0.0
    %1450 = vmatprep.subr.mxu0 0.0
    %1451 = vmatpush1.msra.mxu0 0.0
    %1452 = vmatprep.subr.mxu0 0.0
    %1453 = vmatpush1.msra.mxu0 0.0
    %1454 = vmatprep.subr.mxu0 0.0
    %1455 = vmatpush1.msra.mxu0 0.0
    %1456 = vmatprep.subr.mxu0 0.0
    %1457 = vmatpush1.msra.mxu0 0.0
    %1458 = vmatprep.subr.mxu0 0.0
    %1459 = vmatpush1.msra.mxu0 0.0
    %1460 = vmatprep.subr.mxu0 0.0
    %1461 = vmatpush1.msra.mxu0 0.0
    %1462 = vmatprep.subr.mxu0 0.0
    %1463 = vmatpush1.msra.mxu0 0.0
    %1464 = vmatprep.subr.mxu0 0.0
    %1465 = vmatpush1.msra.mxu0 0.0
    %1466 = vmatprep.subr.mxu0 0.0
    %1467 = vmatpush1.msra.mxu0 0.0
    %1468 = vmatprep.subr.mxu0 0.0
    %1469 = vmatpush1.msra.mxu0 0.0
    %1470 = vmatprep.subr.mxu0 0.0
    %1471 = vmatpush1.msra.mxu0 0.0
    %1472 = vmatprep.subr.mxu0 0.0
    %1473 = vmatpush1.msra.mxu0 0.0
    %1474 = vmatprep.subr.mxu0 0.0
    %1475 = vmatpush1.msra.mxu0 0.0
    %1476 = vmatprep.subr.mxu0 0.0
    %1477 = vmatpush1.msra.mxu0 0.0
    %1478 = vmatprep.subr.mxu0 0.0
    %1479 = vmatpush1.msra.mxu0 0.0
    %1480 = vmatprep.subr.mxu0 0.0
    %1481 = vmatpush1.msra.mxu0 0.0
    %1482 = vmatprep.subr.mxu0 0.0
    %1483 = vmatpush1.msra.mxu0 0.0
    %1484 = vmatprep.subr.mxu0 0.0
    %1485 = vmatpush1.msra.mxu0 0.0
    %1486 = vmatprep.subr.mxu0 0.0
    %1487 = vmatpush1.msra.mxu0 0.0
    %1488 = vmatprep.subr.mxu0 0.0
    %1489 = vmatpush1.msra.mxu0 0.0
    %1490 = vmatprep.subr.mxu0 0.0
    %1491 = vmatpush1.msra.mxu0 0.0
    %1492 = vmatprep.mubr.f32.mxu0 0.0
    %1493 = vmatmul.mubr.f32.gmra.mrb[0].mxu0 %v1426
    %v1494 = vpop.f32.mrb[0].mxu0
    %v1495 = vadd.f32 %v1423, %v1494
    %v1496 = vpop.f32.mrb[0].mxu0
    %1497 = vdwg.mxu0
    %v1498 = vmax.f32 %v1495, 0.0
    %v1499 = vld [vmem:[%s11] sm:$0xff]
    %v1500 = vld [vmem:[%s11 + $0x8] sm:$0xff]
    %v1501 = vld [vmem:[%s11 + $0x10] sm:$0xff]
    %v1502 = vld [vmem:[%s11 + $0x18] sm:$0xff]
    %v1503 = vld [vmem:[#allocation2] sm:$0x1]
    %v1505 = vlaneseq
    %v1506 = vshrl.u32 %v1505, 7
    %v1507 = vsub.s32 0, %v1506
    %v1508 = vrot.slane %v1503, %v1507
    %v1511 = vsel %vm168, %v1498, 0
    %1513 = vmatprep.subr.mxu0 0.0
    %1514 = vmatpush1.msra.mxu0 %v1499
    %1515 = vmatprep.subr.mxu0 0.0
    %1516 = vmatpush1.msra.mxu0 %v1500
    %1517 = vmatprep.subr.mxu0 0.0
    %1518 = vmatpush1.msra.mxu0 %v1501
    %1519 = vmatprep.subr.mxu0 0.0
    %1520 = vmatpush1.msra.mxu0 %v1502
    %1521 = vmatprep.subr.mxu0 0.0
    %1522 = vmatpush1.msra.mxu0 0.0
    %1523 = vmatprep.subr.mxu0 0.0
    %1524 = vmatpush1.msra.mxu0 0.0
    %1525 = vmatprep.subr.mxu0 0.0
    %1526 = vmatpush1.msra.mxu0 0.0
    %1527 = vmatprep.subr.mxu0 0.0
    %1528 = vmatpush1.msra.mxu0 0.0
    %1529 = vmatprep.subr.mxu0 0.0
    %1530 = vmatpush1.msra.mxu0 0.0
    %1531 = vmatprep.subr.mxu0 0.0
    %1532 = vmatpush1.msra.mxu0 0.0
    %1533 = vmatprep.subr.mxu0 0.0
    %1534 = vmatpush1.msra.mxu0 0.0
    %1535 = vmatprep.subr.mxu0 0.0
    %1536 = vmatpush1.msra.mxu0 0.0
    %1537 = vmatprep.subr.mxu0 0.0
    %1538 = vmatpush1.msra.mxu0 0.0
    %1539 = vmatprep.subr.mxu0 0.0
    %1540 = vmatpush1.msra.mxu0 0.0
    %1541 = vmatprep.subr.mxu0 0.0
    %1542 = vmatpush1.msra.mxu0 0.0
    %1543 = vmatprep.subr.mxu0 0.0
    %1544 = vmatpush1.msra.mxu0 0.0
    %1545 = vmatprep.subr.mxu0 0.0
    %1546 = vmatpush1.msra.mxu0 0.0
    %1547 = vmatprep.subr.mxu0 0.0
    %1548 = vmatpush1.msra.mxu0 0.0
    %1549 = vmatprep.subr.mxu0 0.0
    %1550 = vmatpush1.msra.mxu0 0.0
    %1551 = vmatprep.subr.mxu0 0.0
    %1552 = vmatpush1.msra.mxu0 0.0
    %1553 = vmatprep.subr.mxu0 0.0
    %1554 = vmatpush1.msra.mxu0 0.0
    %1555 = vmatprep.subr.mxu0 0.0
    %1556 = vmatpush1.msra.mxu0 0.0
    %1557 = vmatprep.subr.mxu0 0.0
    %1558 = vmatpush1.msra.mxu0 0.0
    %1559 = vmatprep.subr.mxu0 0.0
    %1560 = vmatpush1.msra.mxu0 0.0
    %1561 = vmatprep.subr.mxu0 0.0
    %1562 = vmatpush1.msra.mxu0 0.0
    %1563 = vmatprep.subr.mxu0 0.0
    %1564 = vmatpush1.msra.mxu0 0.0
    %1565 = vmatprep.subr.mxu0 0.0
    %1566 = vmatpush1.msra.mxu0 0.0
    %1567 = vmatprep.subr.mxu0 0.0
    %1568 = vmatpush1.msra.mxu0 0.0
    %1569 = vmatprep.subr.mxu0 0.0
    %1570 = vmatpush1.msra.mxu0 0.0
    %1571 = vmatprep.subr.mxu0 0.0
    %1572 = vmatpush1.msra.mxu0 0.0
    %1573 = vmatprep.subr.mxu0 0.0
    %1574 = vmatpush1.msra.mxu0 0.0
    %1575 = vmatprep.subr.mxu0 0.0
    %1576 = vmatpush1.msra.mxu0 0.0
    %1577 = vmatprep.mubr.f32.mxu0 0.0
    %1578 = vmatmul.mubr.f32.gmra.mrb[0].mxu0 %v1511
    %v1579 = vpop.f32.mrb[0].mxu0
    %v1580 = vadd.f32 %v1508, %v1579
    %v1581 = vpop.f32.mrb[0].mxu0
    %1582 = vdwg.mxu0
    %v1583 = vmax.f32 %v1580, 0.0
    %v1584 = vand.u32 2147483647, %v1580
    %v1585 = vsub.f32 0.0, %v1584
    %v1586 = vmul.f32 %v1585, 1.442695
    %v1587 = vpow.pop %v1586
    %v1588 = vadd.f32 %v1587, 1.0
    %v1589 = vlog2.pop %v1588
    %v1590 = vmul.f32 %v1589, 0.6931472
    %v1591 = vadd.f32 %v1583, %v1590
    %vm1592 = vcmask 1024
    %1593 = vst.msk [vmem:[%s13] sm:$0x3] %vm1592, %v1591
    // Predicated region
    $region58: #{pore_graph_gnn_forward.1} parent=1 // pred_check
      _
    $region59: #{pore_graph_gnn_forward.1} parent=1 // pred_check_branch
      %1595 = sbr.rel (0) target = $region61
    $region60: #{pore_graph_gnn_forward.1} parent=1 // pred_region
      _
    $region61: #{pore_graph_gnn_forward.1} parent=1 // pred_fallthru
      _
    // Predicated region
    $region62: #{pore_graph_gnn_forward.1} parent=1 // pred_check
      _
    $region63: #{pore_graph_gnn_forward.1} parent=1 // pred_check_branch
      %1597 = sbr.rel (0) target = $region65
    $region64: #{pore_graph_gnn_forward.1} parent=1 // pred_region
      _
    $region65: #{pore_graph_gnn_forward.1} parent=1 // pred_fallthru
      _
    %1598 = vsyncpa [#allocation4], 1

</llo_original>
